<compile_context>
chip_gen: v7x
topology: tpu7x:2x2x1
jax: 0.10.0
libtpu: 0.0.40
codegen_flags: <defaults>
</compile_context>

<pallas_src>
import functools

import jax
import jax.numpy as jnp
from jax import lax
from jax.experimental import pallas as pl
from jax.experimental.pallas import tpu as pltpu


def _fused_pool_kernel(x_ref, o_ref, pad_ref, *, steps, planes, h0, w0):
    """`steps` fused AvgPool2d(3, stride=2, pad=1) over `planes` stacked planes.

    x_ref:   (planes * h0, w0)  input planes stacked along rows (sublanes).
    o_ref:   (planes * hf, wf)  pooled planes stacked along rows.
    pad_ref: (h0 + 2, w0 + 2)   f32 scratch holding one zero-padded plane.
    """
    # Per-step 0/1 column-pooling matrices, built once and shared by every
    # plane in this block: pool[c, j] == 1 iff padded column c feeds output
    # column j, i.e. c in {2j, 2j+1, 2j+2}.
    plan = []
    h, w = h0, w0
    for _ in range(steps):
        ho, wo = (h + 1) // 2, (w + 1) // 2
        c_idx = lax.broadcasted_iota(jnp.int32, (w + 2, wo), 0)
        j_idx = lax.broadcasted_iota(jnp.int32, (w + 2, wo), 1)
        delta = c_idx - 2 * j_idx
        pool = jnp.where((delta >= 0) & (delta <= 2), 1.0, 0.0).astype(jnp.bfloat16)
        plan.append((h, w, ho, wo, pool))
        h, w = ho, wo
    hf, wf = h, w

    for p in range(planes):
        cur = x_ref[p * h0:(p + 1) * h0, :].astype(jnp.float32)
        for h, w, ho, wo, pool in plan:
            # ---- zero-padded copy of the current plane in VMEM scratch ----
            pad_ref[0:1, 0:w + 2] = jnp.zeros((1, w + 2), jnp.float32)
            pad_ref[h + 1:h + 2, 0:w + 2] = jnp.zeros((1, w + 2), jnp.float32)
            pad_ref[1:h + 1, 0:1] = jnp.zeros((h, 1), jnp.float32)
            pad_ref[1:h + 1, w + 1:w + 2] = jnp.zeros((h, 1), jnp.float32)
            pad_ref[1:h + 1, 1:w + 1] = cur

            # ---- 3-tap / stride-2 sum along rows (sublane-strided + VPU) ----
            rows = (pad_ref[pl.ds(0, ho, 2), 0:w + 2]
                    + pad_ref[pl.ds(1, ho, 2), 0:w + 2]
                    + pad_ref[pl.ds(2, ho, 2), 0:w + 2])          # (ho, w+2) f32

            # ---- 3-tap / stride-2 sum along cols on the MXU ----
            # Exact 3-way bf16 split of the f32 row sums (each residual is a
            # Sterbenz-exact subtraction), so three plain bf16 matmuls against
            # the 0/1 pooling matrix reproduce the f32 result to ~2^-24.
            p0 = rows.astype(jnp.bfloat16)
            r1 = rows - p0.astype(jnp.float32)
            p1 = r1.astype(jnp.bfloat16)
            r2 = r1 - p1.astype(jnp.float32)
            p2 = r2.astype(jnp.bfloat16)
            acc = (jnp.dot(p0, pool, preferred_element_type=jnp.float32)
                   + jnp.dot(p1, pool, preferred_element_type=jnp.float32)
                   + jnp.dot(p2, pool, preferred_element_type=jnp.float32))
            cur = acc * (1.0 / 9.0)                               # (ho, wo) f32

        o_ref[p * hf:(p + 1) * hf, :] = cur.astype(o_ref.dtype)


def _choose_planes_per_block(bc: int, h: int, w: int, hf: int, wf: int,
                             in_bytes: int, out_bytes: int) -> int:
    """How many image planes to pack into one grid block.

    Small planes are grouped (targeting ~1 MiB of input per block) to amortize
    per-grid-step overhead; large planes stay one-per-step.  The whole working
    set (double-buffered blocks + pad scratch + f32 temporaries, accounting for
    the (8,128) VMEM tile padding) is kept well under the 32 MiB scoped-VMEM
    limit, and we keep >= 2 grid steps whenever possible so the DMA pipeline
    overlaps and v7x can shard the grid across both TensorCores.
    """
    r8 = lambda v: -(-v // 8) * 8
    r128 = lambda v: -(-v // 128) * 128

    def block_bytes(n):
        b = 2 * r8(n * h) * r128(w) * in_bytes         # double-buffered input
        b += 2 * r8(n * hf) * r128(wf) * out_bytes     # double-buffered output
        b += r8(h + 2) * r128(w + 2) * 4               # zero-padded plane scratch
        b += 4 * r8(h) * r128(w + 2) * 4               # in-flight f32 temporaries
        return b

    plane_in = r8(h) * r128(w) * in_bytes
    limit = min(bc, 8, max(1, (1 << 20) // max(plane_in, 1)))
    if bc >= 2:
        limit = max(1, min(limit, bc // 2))            # keep >= 2 grid steps
    budget = 24 * 1024 * 1024
    best = 1
    for n in range(1, limit + 1):
        if bc % n == 0 and block_bytes(n) <= budget:
            best = n
    return best


def input_projection_a(x_nchw: jnp.ndarray, sampling_times: int) -> jnp.ndarray:
    """Equivalent of InputProjectionA(samplingTimes).forward(x), NCHW in/out."""
    if sampling_times == 0:
        return x_nchw

    n, c, h, w = x_nchw.shape
    bc = n * c
    hf, wf = h, w
    for _ in range(sampling_times):
        hf, wf = (hf + 1) // 2, (wf + 1) // 2

    itemsize = jnp.dtype(x_nchw.dtype).itemsize
    planes = _choose_planes_per_block(bc, h, w, hf, wf, itemsize, itemsize)
    g = bc // planes

    # Free, contiguous reshape: planes of a group stack along the row axis.
    xg = x_nchw.reshape(g, planes * h, w)

    out = pl.pallas_call(
        functools.partial(_fused_pool_kernel, steps=sampling_times,
                          planes=planes, h0=h, w0=w),
        out_shape=jax.ShapeDtypeStruct((g, planes * hf, wf), x_nchw.dtype),
        grid_spec=pltpu.PrefetchScalarGridSpec(
            num_scalar_prefetch=0,
            grid=(g,),
            in_specs=[pl.BlockSpec((None, planes * h, w), lambda i: (i, 0, 0))],
            out_specs=pl.BlockSpec((None, planes * hf, wf), lambda i: (i, 0, 0)),
            scratch_shapes=[pltpu.VMEM((h + 2, w + 2), jnp.float32)],
        ),
        compiler_params=pltpu.CompilerParams(
            dimension_semantics=("parallel",),
            vmem_limit_bytes=32 * 1024 * 1024,
        ),
    )(xg)

    return out.reshape(n, c, hf, wf)


def _reference(x_nchw: jnp.ndarray, sampling_times: int) -> jnp.ndarray:
    """Pure-JAX reference: AvgPool2d(3, 2, 1) with count_include_pad=True."""
    out = x_nchw.astype(jnp.float32)
    for _ in range(sampling_times):
        summed = lax.reduce_window(
            out,
            0.0,
            lax.add,
            window_dimensions=(1, 1, 3, 3),
            window_strides=(1, 1, 2, 2),
            padding=((0, 0), (0, 0), (1, 1), (1, 1)),
        )
        out = summed / 9.0
    return out


if __name__ == "__main__":
    # Module has no learnable parameters (AvgPool2d only).
    sampling_times = 2
    N, C, H, W = 2, 4, 16, 16

    key = jax.random.PRNGKey(0)
    x = jax.random.normal(key, (N, C, H, W), dtype=jnp.float32)

    fwd = jax.jit(functools.partial(input_projection_a,
                                    sampling_times=sampling_times))
    y = jax.block_until_ready(fwd(x))

    y_ref = _reference(x, sampling_times)
    assert y.shape == y_ref.shape, (y.shape, y_ref.shape)
    assert jnp.allclose(y, y_ref, atol=1e-5, rtol=1e-5), "mismatch vs reference"

    print("KERNEL_OK")
</pallas_src>

<mosaic_0001>
module attributes {stable_mosaic.version = 11 : i64} {
  func.func @_fused_pool_kernel(%arg0: i32, %arg1: memref<1x64x16xf32, #tpu.memory_space<vmem>>, %arg2: memref<1x16x4xf32, #tpu.memory_space<vmem>>, %arg3: memref<18x18xf32, #tpu.memory_space<vmem>>) attributes {dimension_semantics = [#tpu.dimension_semantics<parallel>], iteration_bounds = array<i64: 2>, scalar_prefetch = 0 : i64, scratch_operands = 1 : i64, tpu.core_type = #tpu.core_type<tc>, window_params = [{transform_indices = @transform_0, window_bounds = array<i64: 1, 64, 16>}, {transform_indices = @transform_1, window_bounds = array<i64: 1, 16, 4>}]} {
    %0 = tpu.iota {dimensions = array<i32: 0>} : vector<18x8xi32>
    %1 = tpu.iota {dimensions = array<i32: 1>} : vector<18x8xi32>
    %c2_i32 = arith.constant 2 : i32
    %2 = vector.broadcast %c2_i32 : i32 to vector<18x8xi32>
    %3 = arith.muli %2, %1 : vector<18x8xi32>
    %4 = arith.subi %0, %3 : vector<18x8xi32>
    %c0_i32 = arith.constant 0 : i32
    %5 = vector.broadcast %c0_i32 : i32 to vector<18x8xi32>
    %6 = arith.cmpi sge, %4, %5 : vector<18x8xi32>
    %c2_i32_0 = arith.constant 2 : i32
    %7 = vector.broadcast %c2_i32_0 : i32 to vector<18x8xi32>
    %8 = arith.cmpi sle, %4, %7 : vector<18x8xi32>
    %9 = arith.andi %6, %8 : vector<18x8xi1>
    %cst = arith.constant 1.000000e+00 : f32
    %cst_1 = arith.constant 0.000000e+00 : f32
    %10 = vector.broadcast %cst : f32 to vector<18x8xf32>
    %11 = vector.broadcast %cst_1 : f32 to vector<18x8xf32>
    %12 = arith.select %9, %10, %11 : vector<18x8xi1>, vector<18x8xf32>
    %13 = arith.truncf %12 : vector<18x8xf32> to vector<18x8xbf16>
    %14 = tpu.iota {dimensions = array<i32: 0>} : vector<10x4xi32>
    %15 = tpu.iota {dimensions = array<i32: 1>} : vector<10x4xi32>
    %c2_i32_2 = arith.constant 2 : i32
    %16 = vector.broadcast %c2_i32_2 : i32 to vector<10x4xi32>
    %17 = arith.muli %16, %15 : vector<10x4xi32>
    %18 = arith.subi %14, %17 : vector<10x4xi32>
    %c0_i32_3 = arith.constant 0 : i32
    %19 = vector.broadcast %c0_i32_3 : i32 to vector<10x4xi32>
    %20 = arith.cmpi sge, %18, %19 : vector<10x4xi32>
    %c2_i32_4 = arith.constant 2 : i32
    %21 = vector.broadcast %c2_i32_4 : i32 to vector<10x4xi32>
    %22 = arith.cmpi sle, %18, %21 : vector<10x4xi32>
    %23 = arith.andi %20, %22 : vector<10x4xi1>
    %cst_5 = arith.constant 1.000000e+00 : f32
    %cst_6 = arith.constant 0.000000e+00 : f32
    %24 = vector.broadcast %cst_5 : f32 to vector<10x4xf32>
    %25 = vector.broadcast %cst_6 : f32 to vector<10x4xf32>
    %26 = arith.select %23, %24, %25 : vector<10x4xi1>, vector<10x4xf32>
    %27 = arith.truncf %26 : vector<10x4xf32> to vector<10x4xbf16>
    %c0 = arith.constant 0 : index
    %c0_7 = arith.constant 0 : index
    %c0_8 = arith.constant 0 : index
    %28 = vector.load %arg1[%c0, %c0_7, %c0_8] : memref<1x64x16xf32, #tpu.memory_space<vmem>>, vector<1x16x16xf32>
    %29 = vector.shape_cast %28 : vector<1x16x16xf32> to vector<16x16xf32>
    %cst_9 = arith.constant 0.000000e+00 : f32
    %30 = vector.broadcast %cst_9 : f32 to vector<1x18xf32>
    %c0_10 = arith.constant 0 : index
    %c0_11 = arith.constant 0 : index
    %31 = vector.load %arg3[%c0_10, %c0_11] : memref<18x18xf32, #tpu.memory_space<vmem>>, vector<1x18xf32>
    tpu.vector_store %arg3[%c0_10, %c0_11], %30 {strides = array<i32>} : memref<18x18xf32, #tpu.memory_space<vmem>>, vector<1x18xf32>,
    %cst_12 = arith.constant 0.000000e+00 : f32
    %32 = vector.broadcast %cst_12 : f32 to vector<1x18xf32>
    %c17 = arith.constant 17 : index
    %c0_13 = arith.constant 0 : index
    %33 = vector.load %arg3[%c17, %c0_13] : memref<18x18xf32, #tpu.memory_space<vmem>>, vector<1x18xf32>
    tpu.vector_store %arg3[%c17, %c0_13], %32 {strides = array<i32>} : memref<18x18xf32, #tpu.memory_space<vmem>>, vector<1x18xf32>,
    %cst_14 = arith.constant 0.000000e+00 : f32
    %34 = vector.broadcast %cst_14 : f32 to vector<16x1xf32>
    %c1 = arith.constant 1 : index
    %c0_15 = arith.constant 0 : index
    %35 = vector.load %arg3[%c1, %c0_15] : memref<18x18xf32, #tpu.memory_space<vmem>>, vector<16x1xf32>
    tpu.vector_store %arg3[%c1, %c0_15], %34 {strides = array<i32>} : memref<18x18xf32, #tpu.memory_space<vmem>>, vector<16x1xf32>,
    %cst_16 = arith.constant 0.000000e+00 : f32
    %36 = vector.broadcast %cst_16 : f32 to vector<16x1xf32>
    %c1_17 = arith.constant 1 : index
    %c17_18 = arith.constant 17 : index
    %37 = vector.load %arg3[%c1_17, %c17_18] : memref<18x18xf32, #tpu.memory_space<vmem>>, vector<16x1xf32>
    tpu.vector_store %arg3[%c1_17, %c17_18], %36 {strides = array<i32>} : memref<18x18xf32, #tpu.memory_space<vmem>>, vector<16x1xf32>,
    %c1_19 = arith.constant 1 : index
    %c1_20 = arith.constant 1 : index
    %38 = vector.load %arg3[%c1_19, %c1_20] : memref<18x18xf32, #tpu.memory_space<vmem>>, vector<16x16xf32>
    tpu.vector_store %arg3[%c1_19, %c1_20], %29 {strides = array<i32>} : memref<18x18xf32, #tpu.memory_space<vmem>>, vector<16x16xf32>,
    %c0_21 = arith.constant 0 : index
    %c0_22 = arith.constant 0 : index
    %39 = tpu.strided_load %arg3[%c0_21, %c0_22] {strides = array<i32: 2, 1>} : memref<18x18xf32, #tpu.memory_space<vmem>>, vector<8x18xf32>
    %c1_23 = arith.constant 1 : index
    %c0_24 = arith.constant 0 : index
    %40 = tpu.strided_load %arg3[%c1_23, %c0_24] {strides = array<i32: 2, 1>} : memref<18x18xf32, #tpu.memory_space<vmem>>, vector<8x18xf32>
    %41 = arith.addf %39, %40 : vector<8x18xf32>
    %c2 = arith.constant 2 : index
    %c0_25 = arith.constant 0 : index
    %42 = tpu.strided_load %arg3[%c2, %c0_25] {strides = array<i32: 2, 1>} : memref<18x18xf32, #tpu.memory_space<vmem>>, vector<8x18xf32>
    %43 = arith.addf %41, %42 : vector<8x18xf32>
    %44 = arith.truncf %43 : vector<8x18xf32> to vector<8x18xbf16>
    %45 = arith.extf %44 : vector<8x18xbf16> to vector<8x18xf32>
    %46 = arith.subf %43, %45 : vector<8x18xf32>
    %47 = arith.truncf %46 : vector<8x18xf32> to vector<8x18xbf16>
    %48 = arith.extf %47 : vector<8x18xbf16> to vector<8x18xf32>
    %49 = arith.subf %46, %48 : vector<8x18xf32>
    %50 = arith.truncf %49 : vector<8x18xf32> to vector<8x18xbf16>
    %cst_26 = arith.constant dense<0.000000e+00> : vector<8x8xf32>
    %51 = tpu.matmul %44, %13, %cst_26 {dimension_numbers = #tpu.dot_dimension_numbers<[1], [0], [0], [1], [0, 0, 1, 1], [], []>} : vector<8x18xbf16>, vector<18x8xbf16>, vector<8x8xf32> -> vector<8x8xf32>
    %cst_27 = arith.constant dense<0.000000e+00> : vector<8x8xf32>
    %52 = tpu.matmul %47, %13, %cst_27 {dimension_numbers = #tpu.dot_dimension_numbers<[1], [0], [0], [1], [0, 0, 1, 1], [], []>} : vector<8x18xbf16>, vector<18x8xbf16>, vector<8x8xf32> -> vector<8x8xf32>
    %53 = arith.addf %51, %52 : vector<8x8xf32>
    %cst_28 = arith.constant dense<0.000000e+00> : vector<8x8xf32>
    %54 = tpu.matmul %50, %13, %cst_28 {dimension_numbers = #tpu.dot_dimension_numbers<[1], [0], [0], [1], [0, 0, 1, 1], [], []>} : vector<8x18xbf16>, vector<18x8xbf16>, vector<8x8xf32> -> vector<8x8xf32>
    %55 = arith.addf %53, %54 : vector<8x8xf32>
    %cst_29 = arith.constant 0.111111112 : f32
    %56 = vector.broadcast %cst_29 : f32 to vector<8x8xf32>
    %57 = arith.mulf %55, %56 : vector<8x8xf32>
    %cst_30 = arith.constant 0.000000e+00 : f32
    %58 = vector.broadcast %cst_30 : f32 to vector<1x10xf32>
    %c0_31 = arith.constant 0 : index
    %c0_32 = arith.constant 0 : index
    %59 = vector.load %arg3[%c0_31, %c0_32] : memref<18x18xf32, #tpu.memory_space<vmem>>, vector<1x10xf32>
    tpu.vector_store %arg3[%c0_31, %c0_32], %58 {strides = array<i32>} : memref<18x18xf32, #tpu.memory_space<vmem>>, vector<1x10xf32>,
    %cst_33 = arith.constant 0.000000e+00 : f32
    %60 = vector.broadcast %cst_33 : f32 to vector<1x10xf32>
    %c9 = arith.constant 9 : index
    %c0_34 = arith.constant 0 : index
    %61 = vector.load %arg3[%c9, %c0_34] : memref<18x18xf32, #tpu.memory_space<vmem>>, vector<1x10xf32>
    tpu.vector_store %arg3[%c9, %c0_34], %60 {strides = array<i32>} : memref<18x18xf32, #tpu.memory_space<vmem>>, vector<1x10xf32>,
    %cst_35 = arith.constant 0.000000e+00 : f32
    %62 = vector.broadcast %cst_35 : f32 to vector<8x1xf32>
    %c1_36 = arith.constant 1 : index
    %c0_37 = arith.constant 0 : index
    %63 = vector.load %arg3[%c1_36, %c0_37] : memref<18x18xf32, #tpu.memory_space<vmem>>, vector<8x1xf32>
    tpu.vector_store %arg3[%c1_36, %c0_37], %62 {strides = array<i32>} : memref<18x18xf32, #tpu.memory_space<vmem>>, vector<8x1xf32>,
    %cst_38 = arith.constant 0.000000e+00 : f32
    %64 = vector.broadcast %cst_38 : f32 to vector<8x1xf32>
    %c1_39 = arith.constant 1 : index
    %c9_40 = arith.constant 9 : index
    %65 = vector.load %arg3[%c1_39, %c9_40] : memref<18x18xf32, #tpu.memory_space<vmem>>, vector<8x1xf32>
    tpu.vector_store %arg3[%c1_39, %c9_40], %64 {strides = array<i32>} : memref<18x18xf32, #tpu.memory_space<vmem>>, vector<8x1xf32>,
    %c1_41 = arith.constant 1 : index
    %c1_42 = arith.constant 1 : index
    %66 = vector.load %arg3[%c1_41, %c1_42] : memref<18x18xf32, #tpu.memory_space<vmem>>, vector<8x8xf32>
    tpu.vector_store %arg3[%c1_41, %c1_42], %57 {strides = array<i32>} : memref<18x18xf32, #tpu.memory_space<vmem>>, vector<8x8xf32>,
    %c0_43 = arith.constant 0 : index
    %c0_44 = arith.constant 0 : index
    %67 = tpu.strided_load %arg3[%c0_43, %c0_44] {strides = array<i32: 2, 1>} : memref<18x18xf32, #tpu.memory_space<vmem>>, vector<4x10xf32>
    %c1_45 = arith.constant 1 : index
    %c0_46 = arith.constant 0 : index
    %68 = tpu.strided_load %arg3[%c1_45, %c0_46] {strides = array<i32: 2, 1>} : memref<18x18xf32, #tpu.memory_space<vmem>>, vector<4x10xf32>
    %69 = arith.addf %67, %68 : vector<4x10xf32>
    %c2_47 = arith.constant 2 : index
    %c0_48 = arith.constant 0 : index
    %70 = tpu.strided_load %arg3[%c2_47, %c0_48] {strides = array<i32: 2, 1>} : memref<18x18xf32, #tpu.memory_space<vmem>>, vector<4x10xf32>
    %71 = arith.addf %69, %70 : vector<4x10xf32>
    %72 = arith.truncf %71 : vector<4x10xf32> to vector<4x10xbf16>
    %73 = arith.extf %72 : vector<4x10xbf16> to vector<4x10xf32>
    %74 = arith.subf %71, %73 : vector<4x10xf32>
    %75 = arith.truncf %74 : vector<4x10xf32> to vector<4x10xbf16>
    %76 = arith.extf %75 : vector<4x10xbf16> to vector<4x10xf32>
    %77 = arith.subf %74, %76 : vector<4x10xf32>
    %78 = arith.truncf %77 : vector<4x10xf32> to vector<4x10xbf16>
    %cst_49 = arith.constant dense<0.000000e+00> : vector<4x4xf32>
    %79 = tpu.matmul %72, %27, %cst_49 {dimension_numbers = #tpu.dot_dimension_numbers<[1], [0], [0], [1], [0, 0, 1, 1], [], []>} : vector<4x10xbf16>, vector<10x4xbf16>, vector<4x4xf32> -> vector<4x4xf32>
    %cst_50 = arith.constant dense<0.000000e+00> : vector<4x4xf32>
    %80 = tpu.matmul %75, %27, %cst_50 {dimension_numbers = #tpu.dot_dimension_numbers<[1], [0], [0], [1], [0, 0, 1, 1], [], []>} : vector<4x10xbf16>, vector<10x4xbf16>, vector<4x4xf32> -> vector<4x4xf32>
    %81 = arith.addf %79, %80 : vector<4x4xf32>
    %cst_51 = arith.constant dense<0.000000e+00> : vector<4x4xf32>
    %82 = tpu.matmul %78, %27, %cst_51 {dimension_numbers = #tpu.dot_dimension_numbers<[1], [0], [0], [1], [0, 0, 1, 1], [], []>} : vector<4x10xbf16>, vector<10x4xbf16>, vector<4x4xf32> -> vector<4x4xf32>
    %83 = arith.addf %81, %82 : vector<4x4xf32>
    %cst_52 = arith.constant 0.111111112 : f32
    %84 = vector.broadcast %cst_52 : f32 to vector<4x4xf32>
    %85 = arith.mulf %83, %84 : vector<4x4xf32>
    %c0_53 = arith.constant 0 : index
    %c0_54 = arith.constant 0 : index
    %c0_55 = arith.constant 0 : index
    %86 = vector.load %arg2[%c0_53, %c0_54, %c0_55] : memref<1x16x4xf32, #tpu.memory_space<vmem>>, vector<1x4x4xf32>
    %87 = vector.shape_cast %86 : vector<1x4x4xf32> to vector<4x4xf32>
    %88 = vector.shape_cast %85 : vector<4x4xf32> to vector<1x4x4xf32>
    tpu.vector_store %arg2[%c0_53, %c0_54, %c0_55], %88 {strides = array<i32>} : memref<1x16x4xf32, #tpu.memory_space<vmem>>, vector<1x4x4xf32>,
    %c0_56 = arith.constant 0 : index
    %c16 = arith.constant 16 : index
    %c0_57 = arith.constant 0 : index
    %89 = vector.load %arg1[%c0_56, %c16, %c0_57] : memref<1x64x16xf32, #tpu.memory_space<vmem>>, vector<1x16x16xf32>
    %90 = vector.shape_cast %89 : vector<1x16x16xf32> to vector<16x16xf32>
    %cst_58 = arith.constant 0.000000e+00 : f32
    %91 = vector.broadcast %cst_58 : f32 to vector<1x18xf32>
    %c0_59 = arith.constant 0 : index
    %c0_60 = arith.constant 0 : index
    %92 = vector.load %arg3[%c0_59, %c0_60] : memref<18x18xf32, #tpu.memory_space<vmem>>, vector<1x18xf32>
    tpu.vector_store %arg3[%c0_59, %c0_60], %91 {strides = array<i32>} : memref<18x18xf32, #tpu.memory_space<vmem>>, vector<1x18xf32>,
    %cst_61 = arith.constant 0.000000e+00 : f32
    %93 = vector.broadcast %cst_61 : f32 to vector<1x18xf32>
    %c17_62 = arith.constant 17 : index
    %c0_63 = arith.constant 0 : index
    %94 = vector.load %arg3[%c17_62, %c0_63] : memref<18x18xf32, #tpu.memory_space<vmem>>, vector<1x18xf32>
    tpu.vector_store %arg3[%c17_62, %c0_63], %93 {strides = array<i32>} : memref<18x18xf32, #tpu.memory_space<vmem>>, vector<1x18xf32>,
    %cst_64 = arith.constant 0.000000e+00 : f32
    %95 = vector.broadcast %cst_64 : f32 to vector<16x1xf32>
    %c1_65 = arith.constant 1 : index
    %c0_66 = arith.constant 0 : index
    %96 = vector.load %arg3[%c1_65, %c0_66] : memref<18x18xf32, #tpu.memory_space<vmem>>, vector<16x1xf32>
    tpu.vector_store %arg3[%c1_65, %c0_66], %95 {strides = array<i32>} : memref<18x18xf32, #tpu.memory_space<vmem>>, vector<16x1xf32>,
    %cst_67 = arith.constant 0.000000e+00 : f32
    %97 = vector.broadcast %cst_67 : f32 to vector<16x1xf32>
    %c1_68 = arith.constant 1 : index
    %c17_69 = arith.constant 17 : index
    %98 = vector.load %arg3[%c1_68, %c17_69] : memref<18x18xf32, #tpu.memory_space<vmem>>, vector<16x1xf32>
    tpu.vector_store %arg3[%c1_68, %c17_69], %97 {strides = array<i32>} : memref<18x18xf32, #tpu.memory_space<vmem>>, vector<16x1xf32>,
    %c1_70 = arith.constant 1 : index
    %c1_71 = arith.constant 1 : index
    %99 = vector.load %arg3[%c1_70, %c1_71] : memref<18x18xf32, #tpu.memory_space<vmem>>, vector<16x16xf32>
    tpu.vector_store %arg3[%c1_70, %c1_71], %90 {strides = array<i32>} : memref<18x18xf32, #tpu.memory_space<vmem>>, vector<16x16xf32>,
    %c0_72 = arith.constant 0 : index
    %c0_73 = arith.constant 0 : index
    %100 = tpu.strided_load %arg3[%c0_72, %c0_73] {strides = array<i32: 2, 1>} : memref<18x18xf32, #tpu.memory_space<vmem>>, vector<8x18xf32>
    %c1_74 = arith.constant 1 : index
    %c0_75 = arith.constant 0 : index
    %101 = tpu.strided_load %arg3[%c1_74, %c0_75] {strides = array<i32: 2, 1>} : memref<18x18xf32, #tpu.memory_space<vmem>>, vector<8x18xf32>
    %102 = arith.addf %100, %101 : vector<8x18xf32>
    %c2_76 = arith.constant 2 : index
    %c0_77 = arith.constant 0 : index
    %103 = tpu.strided_load %arg3[%c2_76, %c0_77] {strides = array<i32: 2, 1>} : memref<18x18xf32, #tpu.memory_space<vmem>>, vector<8x18xf32>
    %104 = arith.addf %102, %103 : vector<8x18xf32>
    %105 = arith.truncf %104 : vector<8x18xf32> to vector<8x18xbf16>
    %106 = arith.extf %105 : vector<8x18xbf16> to vector<8x18xf32>
    %107 = arith.subf %104, %106 : vector<8x18xf32>
    %108 = arith.truncf %107 : vector<8x18xf32> to vector<8x18xbf16>
    %109 = arith.extf %108 : vector<8x18xbf16> to vector<8x18xf32>
    %110 = arith.subf %107, %109 : vector<8x18xf32>
    %111 = arith.truncf %110 : vector<8x18xf32> to vector<8x18xbf16>
    %cst_78 = arith.constant dense<0.000000e+00> : vector<8x8xf32>
    %112 = tpu.matmul %105, %13, %cst_78 {dimension_numbers = #tpu.dot_dimension_numbers<[1], [0], [0], [1], [0, 0, 1, 1], [], []>} : vector<8x18xbf16>, vector<18x8xbf16>, vector<8x8xf32> -> vector<8x8xf32>
    %cst_79 = arith.constant dense<0.000000e+00> : vector<8x8xf32>
    %113 = tpu.matmul %108, %13, %cst_79 {dimension_numbers = #tpu.dot_dimension_numbers<[1], [0], [0], [1], [0, 0, 1, 1], [], []>} : vector<8x18xbf16>, vector<18x8xbf16>, vector<8x8xf32> -> vector<8x8xf32>
    %114 = arith.addf %112, %113 : vector<8x8xf32>
    %cst_80 = arith.constant dense<0.000000e+00> : vector<8x8xf32>
    %115 = tpu.matmul %111, %13, %cst_80 {dimension_numbers = #tpu.dot_dimension_numbers<[1], [0], [0], [1], [0, 0, 1, 1], [], []>} : vector<8x18xbf16>, vector<18x8xbf16>, vector<8x8xf32> -> vector<8x8xf32>
    %116 = arith.addf %114, %115 : vector<8x8xf32>
    %cst_81 = arith.constant 0.111111112 : f32
    %117 = vector.broadcast %cst_81 : f32 to vector<8x8xf32>
    %118 = arith.mulf %116, %117 : vector<8x8xf32>
    %cst_82 = arith.constant 0.000000e+00 : f32
    %119 = vector.broadcast %cst_82 : f32 to vector<1x10xf32>
    %c0_83 = arith.constant 0 : index
    %c0_84 = arith.constant 0 : index
    %120 = vector.load %arg3[%c0_83, %c0_84] : memref<18x18xf32, #tpu.memory_space<vmem>>, vector<1x10xf32>
    tpu.vector_store %arg3[%c0_83, %c0_84], %119 {strides = array<i32>} : memref<18x18xf32, #tpu.memory_space<vmem>>, vector<1x10xf32>,
    %cst_85 = arith.constant 0.000000e+00 : f32
    %121 = vector.broadcast %cst_85 : f32 to vector<1x10xf32>
    %c9_86 = arith.constant 9 : index
    %c0_87 = arith.constant 0 : index
    %122 = vector.load %arg3[%c9_86, %c0_87] : memref<18x18xf32, #tpu.memory_space<vmem>>, vector<1x10xf32>
    tpu.vector_store %arg3[%c9_86, %c0_87], %121 {strides = array<i32>} : memref<18x18xf32, #tpu.memory_space<vmem>>, vector<1x10xf32>,
    %cst_88 = arith.constant 0.000000e+00 : f32
    %123 = vector.broadcast %cst_88 : f32 to vector<8x1xf32>
    %c1_89 = arith.constant 1 : index
    %c0_90 = arith.constant 0 : index
    %124 = vector.load %arg3[%c1_89, %c0_90] : memref<18x18xf32, #tpu.memory_space<vmem>>, vector<8x1xf32>
    tpu.vector_store %arg3[%c1_89, %c0_90], %123 {strides = array<i32>} : memref<18x18xf32, #tpu.memory_space<vmem>>, vector<8x1xf32>,
    %cst_91 = arith.constant 0.000000e+00 : f32
    %125 = vector.broadcast %cst_91 : f32 to vector<8x1xf32>
    %c1_92 = arith.constant 1 : index
    %c9_93 = arith.constant 9 : index
    %126 = vector.load %arg3[%c1_92, %c9_93] : memref<18x18xf32, #tpu.memory_space<vmem>>, vector<8x1xf32>
    tpu.vector_store %arg3[%c1_92, %c9_93], %125 {strides = array<i32>} : memref<18x18xf32, #tpu.memory_space<vmem>>, vector<8x1xf32>,
    %c1_94 = arith.constant 1 : index
    %c1_95 = arith.constant 1 : index
    %127 = vector.load %arg3[%c1_94, %c1_95] : memref<18x18xf32, #tpu.memory_space<vmem>>, vector<8x8xf32>
    tpu.vector_store %arg3[%c1_94, %c1_95], %118 {strides = array<i32>} : memref<18x18xf32, #tpu.memory_space<vmem>>, vector<8x8xf32>,
    %c0_96 = arith.constant 0 : index
    %c0_97 = arith.constant 0 : index
    %128 = tpu.strided_load %arg3[%c0_96, %c0_97] {strides = array<i32: 2, 1>} : memref<18x18xf32, #tpu.memory_space<vmem>>, vector<4x10xf32>
    %c1_98 = arith.constant 1 : index
    %c0_99 = arith.constant 0 : index
    %129 = tpu.strided_load %arg3[%c1_98, %c0_99] {strides = array<i32: 2, 1>} : memref<18x18xf32, #tpu.memory_space<vmem>>, vector<4x10xf32>
    %130 = arith.addf %128, %129 : vector<4x10xf32>
    %c2_100 = arith.constant 2 : index
    %c0_101 = arith.constant 0 : index
    %131 = tpu.strided_load %arg3[%c2_100, %c0_101] {strides = array<i32: 2, 1>} : memref<18x18xf32, #tpu.memory_space<vmem>>, vector<4x10xf32>
    %132 = arith.addf %130, %131 : vector<4x10xf32>
    %133 = arith.truncf %132 : vector<4x10xf32> to vector<4x10xbf16>
    %134 = arith.extf %133 : vector<4x10xbf16> to vector<4x10xf32>
    %135 = arith.subf %132, %134 : vector<4x10xf32>
    %136 = arith.truncf %135 : vector<4x10xf32> to vector<4x10xbf16>
    %137 = arith.extf %136 : vector<4x10xbf16> to vector<4x10xf32>
    %138 = arith.subf %135, %137 : vector<4x10xf32>
    %139 = arith.truncf %138 : vector<4x10xf32> to vector<4x10xbf16>
    %cst_102 = arith.constant dense<0.000000e+00> : vector<4x4xf32>
    %140 = tpu.matmul %133, %27, %cst_102 {dimension_numbers = #tpu.dot_dimension_numbers<[1], [0], [0], [1], [0, 0, 1, 1], [], []>} : vector<4x10xbf16>, vector<10x4xbf16>, vector<4x4xf32> -> vector<4x4xf32>
    %cst_103 = arith.constant dense<0.000000e+00> : vector<4x4xf32>
    %141 = tpu.matmul %136, %27, %cst_103 {dimension_numbers = #tpu.dot_dimension_numbers<[1], [0], [0], [1], [0, 0, 1, 1], [], []>} : vector<4x10xbf16>, vector<10x4xbf16>, vector<4x4xf32> -> vector<4x4xf32>
    %142 = arith.addf %140, %141 : vector<4x4xf32>
    %cst_104 = arith.constant dense<0.000000e+00> : vector<4x4xf32>
    %143 = tpu.matmul %139, %27, %cst_104 {dimension_numbers = #tpu.dot_dimension_numbers<[1], [0], [0], [1], [0, 0, 1, 1], [], []>} : vector<4x10xbf16>, vector<10x4xbf16>, vector<4x4xf32> -> vector<4x4xf32>
    %144 = arith.addf %142, %143 : vector<4x4xf32>
    %cst_105 = arith.constant 0.111111112 : f32
    %145 = vector.broadcast %cst_105 : f32 to vector<4x4xf32>
    %146 = arith.mulf %144, %145 : vector<4x4xf32>
    %c0_106 = arith.constant 0 : index
    %c4 = arith.constant 4 : index
    %c0_107 = arith.constant 0 : index
    %147 = vector.load %arg2[%c0_106, %c4, %c0_107] : memref<1x16x4xf32, #tpu.memory_space<vmem>>, vector<1x4x4xf32>
    %148 = vector.shape_cast %147 : vector<1x4x4xf32> to vector<4x4xf32>
    %149 = vector.shape_cast %146 : vector<4x4xf32> to vector<1x4x4xf32>
    tpu.vector_store %arg2[%c0_106, %c4, %c0_107], %149 {strides = array<i32>} : memref<1x16x4xf32, #tpu.memory_space<vmem>>, vector<1x4x4xf32>,
    %c0_108 = arith.constant 0 : index
    %c32 = arith.constant 32 : index
    %c0_109 = arith.constant 0 : index
    %150 = vector.load %arg1[%c0_108, %c32, %c0_109] : memref<1x64x16xf32, #tpu.memory_space<vmem>>, vector<1x16x16xf32>
    %151 = vector.shape_cast %150 : vector<1x16x16xf32> to vector<16x16xf32>
    %cst_110 = arith.constant 0.000000e+00 : f32
    %152 = vector.broadcast %cst_110 : f32 to vector<1x18xf32>
    %c0_111 = arith.constant 0 : index
    %c0_112 = arith.constant 0 : index
    %153 = vector.load %arg3[%c0_111, %c0_112] : memref<18x18xf32, #tpu.memory_space<vmem>>, vector<1x18xf32>
    tpu.vector_store %arg3[%c0_111, %c0_112], %152 {strides = array<i32>} : memref<18x18xf32, #tpu.memory_space<vmem>>, vector<1x18xf32>,
    %cst_113 = arith.constant 0.000000e+00 : f32
    %154 = vector.broadcast %cst_113 : f32 to vector<1x18xf32>
    %c17_114 = arith.constant 17 : index
    %c0_115 = arith.constant 0 : index
    %155 = vector.load %arg3[%c17_114, %c0_115] : memref<18x18xf32, #tpu.memory_space<vmem>>, vector<1x18xf32>
    tpu.vector_store %arg3[%c17_114, %c0_115], %154 {strides = array<i32>} : memref<18x18xf32, #tpu.memory_space<vmem>>, vector<1x18xf32>,
    %cst_116 = arith.constant 0.000000e+00 : f32
    %156 = vector.broadcast %cst_116 : f32 to vector<16x1xf32>
    %c1_117 = arith.constant 1 : index
    %c0_118 = arith.constant 0 : index
    %157 = vector.load %arg3[%c1_117, %c0_118] : memref<18x18xf32, #tpu.memory_space<vmem>>, vector<16x1xf32>
    tpu.vector_store %arg3[%c1_117, %c0_118], %156 {strides = array<i32>} : memref<18x18xf32, #tpu.memory_space<vmem>>, vector<16x1xf32>,
    %cst_119 = arith.constant 0.000000e+00 : f32
    %158 = vector.broadcast %cst_119 : f32 to vector<16x1xf32>
    %c1_120 = arith.constant 1 : index
    %c17_121 = arith.constant 17 : index
    %159 = vector.load %arg3[%c1_120, %c17_121] : memref<18x18xf32, #tpu.memory_space<vmem>>, vector<16x1xf32>
    tpu.vector_store %arg3[%c1_120, %c17_121], %158 {strides = array<i32>} : memref<18x18xf32, #tpu.memory_space<vmem>>, vector<16x1xf32>,
    %c1_122 = arith.constant 1 : index
    %c1_123 = arith.constant 1 : index
    %160 = vector.load %arg3[%c1_122, %c1_123] : memref<18x18xf32, #tpu.memory_space<vmem>>, vector<16x16xf32>
    tpu.vector_store %arg3[%c1_122, %c1_123], %151 {strides = array<i32>} : memref<18x18xf32, #tpu.memory_space<vmem>>, vector<16x16xf32>,
    %c0_124 = arith.constant 0 : index
    %c0_125 = arith.constant 0 : index
    %161 = tpu.strided_load %arg3[%c0_124, %c0_125] {strides = array<i32: 2, 1>} : memref<18x18xf32, #tpu.memory_space<vmem>>, vector<8x18xf32>
    %c1_126 = arith.constant 1 : index
    %c0_127 = arith.constant 0 : index
    %162 = tpu.strided_load %arg3[%c1_126, %c0_127] {strides = array<i32: 2, 1>} : memref<18x18xf32, #tpu.memory_space<vmem>>, vector<8x18xf32>
    %163 = arith.addf %161, %162 : vector<8x18xf32>
    %c2_128 = arith.constant 2 : index
    %c0_129 = arith.constant 0 : index
    %164 = tpu.strided_load %arg3[%c2_128, %c0_129] {strides = array<i32: 2, 1>} : memref<18x18xf32, #tpu.memory_space<vmem>>, vector<8x18xf32>
    %165 = arith.addf %163, %164 : vector<8x18xf32>
    %166 = arith.truncf %165 : vector<8x18xf32> to vector<8x18xbf16>
    %167 = arith.extf %166 : vector<8x18xbf16> to vector<8x18xf32>
    %168 = arith.subf %165, %167 : vector<8x18xf32>
    %169 = arith.truncf %168 : vector<8x18xf32> to vector<8x18xbf16>
    %170 = arith.extf %169 : vector<8x18xbf16> to vector<8x18xf32>
    %171 = arith.subf %168, %170 : vector<8x18xf32>
    %172 = arith.truncf %171 : vector<8x18xf32> to vector<8x18xbf16>
    %cst_130 = arith.constant dense<0.000000e+00> : vector<8x8xf32>
    %173 = tpu.matmul %166, %13, %cst_130 {dimension_numbers = #tpu.dot_dimension_numbers<[1], [0], [0], [1], [0, 0, 1, 1], [], []>} : vector<8x18xbf16>, vector<18x8xbf16>, vector<8x8xf32> -> vector<8x8xf32>
    %cst_131 = arith.constant dense<0.000000e+00> : vector<8x8xf32>
    %174 = tpu.matmul %169, %13, %cst_131 {dimension_numbers = #tpu.dot_dimension_numbers<[1], [0], [0], [1], [0, 0, 1, 1], [], []>} : vector<8x18xbf16>, vector<18x8xbf16>, vector<8x8xf32> -> vector<8x8xf32>
    %175 = arith.addf %173, %174 : vector<8x8xf32>
    %cst_132 = arith.constant dense<0.000000e+00> : vector<8x8xf32>
    %176 = tpu.matmul %172, %13, %cst_132 {dimension_numbers = #tpu.dot_dimension_numbers<[1], [0], [0], [1], [0, 0, 1, 1], [], []>} : vector<8x18xbf16>, vector<18x8xbf16>, vector<8x8xf32> -> vector<8x8xf32>
    %177 = arith.addf %175, %176 : vector<8x8xf32>
    %cst_133 = arith.constant 0.111111112 : f32
    %178 = vector.broadcast %cst_133 : f32 to vector<8x8xf32>
    %179 = arith.mulf %177, %178 : vector<8x8xf32>
    %cst_134 = arith.constant 0.000000e+00 : f32
    %180 = vector.broadcast %cst_134 : f32 to vector<1x10xf32>
    %c0_135 = arith.constant 0 : index
    %c0_136 = arith.constant 0 : index
    %181 = vector.load %arg3[%c0_135, %c0_136] : memref<18x18xf32, #tpu.memory_space<vmem>>, vector<1x10xf32>
    tpu.vector_store %arg3[%c0_135, %c0_136], %180 {strides = array<i32>} : memref<18x18xf32, #tpu.memory_space<vmem>>, vector<1x10xf32>,
    %cst_137 = arith.constant 0.000000e+00 : f32
    %182 = vector.broadcast %cst_137 : f32 to vector<1x10xf32>
    %c9_138 = arith.constant 9 : index
    %c0_139 = arith.constant 0 : index
    %183 = vector.load %arg3[%c9_138, %c0_139] : memref<18x18xf32, #tpu.memory_space<vmem>>, vector<1x10xf32>
    tpu.vector_store %arg3[%c9_138, %c0_139], %182 {strides = array<i32>} : memref<18x18xf32, #tpu.memory_space<vmem>>, vector<1x10xf32>,
    %cst_140 = arith.constant 0.000000e+00 : f32
    %184 = vector.broadcast %cst_140 : f32 to vector<8x1xf32>
    %c1_141 = arith.constant 1 : index
    %c0_142 = arith.constant 0 : index
    %185 = vector.load %arg3[%c1_141, %c0_142] : memref<18x18xf32, #tpu.memory_space<vmem>>, vector<8x1xf32>
    tpu.vector_store %arg3[%c1_141, %c0_142], %184 {strides = array<i32>} : memref<18x18xf32, #tpu.memory_space<vmem>>, vector<8x1xf32>,
    %cst_143 = arith.constant 0.000000e+00 : f32
    %186 = vector.broadcast %cst_143 : f32 to vector<8x1xf32>
    %c1_144 = arith.constant 1 : index
    %c9_145 = arith.constant 9 : index
    %187 = vector.load %arg3[%c1_144, %c9_145] : memref<18x18xf32, #tpu.memory_space<vmem>>, vector<8x1xf32>
    tpu.vector_store %arg3[%c1_144, %c9_145], %186 {strides = array<i32>} : memref<18x18xf32, #tpu.memory_space<vmem>>, vector<8x1xf32>,
    %c1_146 = arith.constant 1 : index
    %c1_147 = arith.constant 1 : index
    %188 = vector.load %arg3[%c1_146, %c1_147] : memref<18x18xf32, #tpu.memory_space<vmem>>, vector<8x8xf32>
    tpu.vector_store %arg3[%c1_146, %c1_147], %179 {strides = array<i32>} : memref<18x18xf32, #tpu.memory_space<vmem>>, vector<8x8xf32>,
    %c0_148 = arith.constant 0 : index
    %c0_149 = arith.constant 0 : index
    %189 = tpu.strided_load %arg3[%c0_148, %c0_149] {strides = array<i32: 2, 1>} : memref<18x18xf32, #tpu.memory_space<vmem>>, vector<4x10xf32>
    %c1_150 = arith.constant 1 : index
    %c0_151 = arith.constant 0 : index
    %190 = tpu.strided_load %arg3[%c1_150, %c0_151] {strides = array<i32: 2, 1>} : memref<18x18xf32, #tpu.memory_space<vmem>>, vector<4x10xf32>
    %191 = arith.addf %189, %190 : vector<4x10xf32>
    %c2_152 = arith.constant 2 : index
    %c0_153 = arith.constant 0 : index
    %192 = tpu.strided_load %arg3[%c2_152, %c0_153] {strides = array<i32: 2, 1>} : memref<18x18xf32, #tpu.memory_space<vmem>>, vector<4x10xf32>
    %193 = arith.addf %191, %192 : vector<4x10xf32>
    %194 = arith.truncf %193 : vector<4x10xf32> to vector<4x10xbf16>
    %195 = arith.extf %194 : vector<4x10xbf16> to vector<4x10xf32>
    %196 = arith.subf %193, %195 : vector<4x10xf32>
    %197 = arith.truncf %196 : vector<4x10xf32> to vector<4x10xbf16>
    %198 = arith.extf %197 : vector<4x10xbf16> to vector<4x10xf32>
    %199 = arith.subf %196, %198 : vector<4x10xf32>
    %200 = arith.truncf %199 : vector<4x10xf32> to vector<4x10xbf16>
    %cst_154 = arith.constant dense<0.000000e+00> : vector<4x4xf32>
    %201 = tpu.matmul %194, %27, %cst_154 {dimension_numbers = #tpu.dot_dimension_numbers<[1], [0], [0], [1], [0, 0, 1, 1], [], []>} : vector<4x10xbf16>, vector<10x4xbf16>, vector<4x4xf32> -> vector<4x4xf32>
    %cst_155 = arith.constant dense<0.000000e+00> : vector<4x4xf32>
    %202 = tpu.matmul %197, %27, %cst_155 {dimension_numbers = #tpu.dot_dimension_numbers<[1], [0], [0], [1], [0, 0, 1, 1], [], []>} : vector<4x10xbf16>, vector<10x4xbf16>, vector<4x4xf32> -> vector<4x4xf32>
    %203 = arith.addf %201, %202 : vector<4x4xf32>
    %cst_156 = arith.constant dense<0.000000e+00> : vector<4x4xf32>
    %204 = tpu.matmul %200, %27, %cst_156 {dimension_numbers = #tpu.dot_dimension_numbers<[1], [0], [0], [1], [0, 0, 1, 1], [], []>} : vector<4x10xbf16>, vector<10x4xbf16>, vector<4x4xf32> -> vector<4x4xf32>
    %205 = arith.addf %203, %204 : vector<4x4xf32>
    %cst_157 = arith.constant 0.111111112 : f32
    %206 = vector.broadcast %cst_157 : f32 to vector<4x4xf32>
    %207 = arith.mulf %205, %206 : vector<4x4xf32>
    %c0_158 = arith.constant 0 : index
    %c8 = arith.constant 8 : index
    %c0_159 = arith.constant 0 : index
    %208 = vector.load %arg2[%c0_158, %c8, %c0_159] : memref<1x16x4xf32, #tpu.memory_space<vmem>>, vector<1x4x4xf32>
    %209 = vector.shape_cast %208 : vector<1x4x4xf32> to vector<4x4xf32>
    %210 = vector.shape_cast %207 : vector<4x4xf32> to vector<1x4x4xf32>
    tpu.vector_store %arg2[%c0_158, %c8, %c0_159], %210 {strides = array<i32>} : memref<1x16x4xf32, #tpu.memory_space<vmem>>, vector<1x4x4xf32>,
    %c0_160 = arith.constant 0 : index
    %c48 = arith.constant 48 : index
    %c0_161 = arith.constant 0 : index
    %211 = vector.load %arg1[%c0_160, %c48, %c0_161] : memref<1x64x16xf32, #tpu.memory_space<vmem>>, vector<1x16x16xf32>
    %212 = vector.shape_cast %211 : vector<1x16x16xf32> to vector<16x16xf32>
    %cst_162 = arith.constant 0.000000e+00 : f32
    %213 = vector.broadcast %cst_162 : f32 to vector<1x18xf32>
    %c0_163 = arith.constant 0 : index
    %c0_164 = arith.constant 0 : index
    %214 = vector.load %arg3[%c0_163, %c0_164] : memref<18x18xf32, #tpu.memory_space<vmem>>, vector<1x18xf32>
    tpu.vector_store %arg3[%c0_163, %c0_164], %213 {strides = array<i32>} : memref<18x18xf32, #tpu.memory_space<vmem>>, vector<1x18xf32>,
    %cst_165 = arith.constant 0.000000e+00 : f32
    %215 = vector.broadcast %cst_165 : f32 to vector<1x18xf32>
    %c17_166 = arith.constant 17 : index
    %c0_167 = arith.constant 0 : index
    %216 = vector.load %arg3[%c17_166, %c0_167] : memref<18x18xf32, #tpu.memory_space<vmem>>, vector<1x18xf32>
    tpu.vector_store %arg3[%c17_166, %c0_167], %215 {strides = array<i32>} : memref<18x18xf32, #tpu.memory_space<vmem>>, vector<1x18xf32>,
    %cst_168 = arith.constant 0.000000e+00 : f32
    %217 = vector.broadcast %cst_168 : f32 to vector<16x1xf32>
    %c1_169 = arith.constant 1 : index
    %c0_170 = arith.constant 0 : index
    %218 = vector.load %arg3[%c1_169, %c0_170] : memref<18x18xf32, #tpu.memory_space<vmem>>, vector<16x1xf32>
    tpu.vector_store %arg3[%c1_169, %c0_170], %217 {strides = array<i32>} : memref<18x18xf32, #tpu.memory_space<vmem>>, vector<16x1xf32>,
    %cst_171 = arith.constant 0.000000e+00 : f32
    %219 = vector.broadcast %cst_171 : f32 to vector<16x1xf32>
    %c1_172 = arith.constant 1 : index
    %c17_173 = arith.constant 17 : index
    %220 = vector.load %arg3[%c1_172, %c17_173] : memref<18x18xf32, #tpu.memory_space<vmem>>, vector<16x1xf32>
    tpu.vector_store %arg3[%c1_172, %c17_173], %219 {strides = array<i32>} : memref<18x18xf32, #tpu.memory_space<vmem>>, vector<16x1xf32>,
    %c1_174 = arith.constant 1 : index
    %c1_175 = arith.constant 1 : index
    %221 = vector.load %arg3[%c1_174, %c1_175] : memref<18x18xf32, #tpu.memory_space<vmem>>, vector<16x16xf32>
    tpu.vector_store %arg3[%c1_174, %c1_175], %212 {strides = array<i32>} : memref<18x18xf32, #tpu.memory_space<vmem>>, vector<16x16xf32>,
    %c0_176 = arith.constant 0 : index
    %c0_177 = arith.constant 0 : index
    %222 = tpu.strided_load %arg3[%c0_176, %c0_177] {strides = array<i32: 2, 1>} : memref<18x18xf32, #tpu.memory_space<vmem>>, vector<8x18xf32>
    %c1_178 = arith.constant 1 : index
    %c0_179 = arith.constant 0 : index
    %223 = tpu.strided_load %arg3[%c1_178, %c0_179] {strides = array<i32: 2, 1>} : memref<18x18xf32, #tpu.memory_space<vmem>>, vector<8x18xf32>
    %224 = arith.addf %222, %223 : vector<8x18xf32>
    %c2_180 = arith.constant 2 : index
    %c0_181 = arith.constant 0 : index
    %225 = tpu.strided_load %arg3[%c2_180, %c0_181] {strides = array<i32: 2, 1>} : memref<18x18xf32, #tpu.memory_space<vmem>>, vector<8x18xf32>
    %226 = arith.addf %224, %225 : vector<8x18xf32>
    %227 = arith.truncf %226 : vector<8x18xf32> to vector<8x18xbf16>
    %228 = arith.extf %227 : vector<8x18xbf16> to vector<8x18xf32>
    %229 = arith.subf %226, %228 : vector<8x18xf32>
    %230 = arith.truncf %229 : vector<8x18xf32> to vector<8x18xbf16>
    %231 = arith.extf %230 : vector<8x18xbf16> to vector<8x18xf32>
    %232 = arith.subf %229, %231 : vector<8x18xf32>
    %233 = arith.truncf %232 : vector<8x18xf32> to vector<8x18xbf16>
    %cst_182 = arith.constant dense<0.000000e+00> : vector<8x8xf32>
    %234 = tpu.matmul %227, %13, %cst_182 {dimension_numbers = #tpu.dot_dimension_numbers<[1], [0], [0], [1], [0, 0, 1, 1], [], []>} : vector<8x18xbf16>, vector<18x8xbf16>, vector<8x8xf32> -> vector<8x8xf32>
    %cst_183 = arith.constant dense<0.000000e+00> : vector<8x8xf32>
    %235 = tpu.matmul %230, %13, %cst_183 {dimension_numbers = #tpu.dot_dimension_numbers<[1], [0], [0], [1], [0, 0, 1, 1], [], []>} : vector<8x18xbf16>, vector<18x8xbf16>, vector<8x8xf32> -> vector<8x8xf32>
    %236 = arith.addf %234, %235 : vector<8x8xf32>
    %cst_184 = arith.constant dense<0.000000e+00> : vector<8x8xf32>
    %237 = tpu.matmul %233, %13, %cst_184 {dimension_numbers = #tpu.dot_dimension_numbers<[1], [0], [0], [1], [0, 0, 1, 1], [], []>} : vector<8x18xbf16>, vector<18x8xbf16>, vector<8x8xf32> -> vector<8x8xf32>
    %238 = arith.addf %236, %237 : vector<8x8xf32>
    %cst_185 = arith.constant 0.111111112 : f32
    %239 = vector.broadcast %cst_185 : f32 to vector<8x8xf32>
    %240 = arith.mulf %238, %239 : vector<8x8xf32>
    %cst_186 = arith.constant 0.000000e+00 : f32
    %241 = vector.broadcast %cst_186 : f32 to vector<1x10xf32>
    %c0_187 = arith.constant 0 : index
    %c0_188 = arith.constant 0 : index
    %242 = vector.load %arg3[%c0_187, %c0_188] : memref<18x18xf32, #tpu.memory_space<vmem>>, vector<1x10xf32>
    tpu.vector_store %arg3[%c0_187, %c0_188], %241 {strides = array<i32>} : memref<18x18xf32, #tpu.memory_space<vmem>>, vector<1x10xf32>,
    %cst_189 = arith.constant 0.000000e+00 : f32
    %243 = vector.broadcast %cst_189 : f32 to vector<1x10xf32>
    %c9_190 = arith.constant 9 : index
    %c0_191 = arith.constant 0 : index
    %244 = vector.load %arg3[%c9_190, %c0_191] : memref<18x18xf32, #tpu.memory_space<vmem>>, vector<1x10xf32>
    tpu.vector_store %arg3[%c9_190, %c0_191], %243 {strides = array<i32>} : memref<18x18xf32, #tpu.memory_space<vmem>>, vector<1x10xf32>,
    %cst_192 = arith.constant 0.000000e+00 : f32
    %245 = vector.broadcast %cst_192 : f32 to vector<8x1xf32>
    %c1_193 = arith.constant 1 : index
    %c0_194 = arith.constant 0 : index
    %246 = vector.load %arg3[%c1_193, %c0_194] : memref<18x18xf32, #tpu.memory_space<vmem>>, vector<8x1xf32>
    tpu.vector_store %arg3[%c1_193, %c0_194], %245 {strides = array<i32>} : memref<18x18xf32, #tpu.memory_space<vmem>>, vector<8x1xf32>,
    %cst_195 = arith.constant 0.000000e+00 : f32
    %247 = vector.broadcast %cst_195 : f32 to vector<8x1xf32>
    %c1_196 = arith.constant 1 : index
    %c9_197 = arith.constant 9 : index
    %248 = vector.load %arg3[%c1_196, %c9_197] : memref<18x18xf32, #tpu.memory_space<vmem>>, vector<8x1xf32>
    tpu.vector_store %arg3[%c1_196, %c9_197], %247 {strides = array<i32>} : memref<18x18xf32, #tpu.memory_space<vmem>>, vector<8x1xf32>,
    %c1_198 = arith.constant 1 : index
    %c1_199 = arith.constant 1 : index
    %249 = vector.load %arg3[%c1_198, %c1_199] : memref<18x18xf32, #tpu.memory_space<vmem>>, vector<8x8xf32>
    tpu.vector_store %arg3[%c1_198, %c1_199], %240 {strides = array<i32>} : memref<18x18xf32, #tpu.memory_space<vmem>>, vector<8x8xf32>,
    %c0_200 = arith.constant 0 : index
    %c0_201 = arith.constant 0 : index
    %250 = tpu.strided_load %arg3[%c0_200, %c0_201] {strides = array<i32: 2, 1>} : memref<18x18xf32, #tpu.memory_space<vmem>>, vector<4x10xf32>
    %c1_202 = arith.constant 1 : index
    %c0_203 = arith.constant 0 : index
    %251 = tpu.strided_load %arg3[%c1_202, %c0_203] {strides = array<i32: 2, 1>} : memref<18x18xf32, #tpu.memory_space<vmem>>, vector<4x10xf32>
    %252 = arith.addf %250, %251 : vector<4x10xf32>
    %c2_204 = arith.constant 2 : index
    %c0_205 = arith.constant 0 : index
    %253 = tpu.strided_load %arg3[%c2_204, %c0_205] {strides = array<i32: 2, 1>} : memref<18x18xf32, #tpu.memory_space<vmem>>, vector<4x10xf32>
    %254 = arith.addf %252, %253 : vector<4x10xf32>
    %255 = arith.truncf %254 : vector<4x10xf32> to vector<4x10xbf16>
    %256 = arith.extf %255 : vector<4x10xbf16> to vector<4x10xf32>
    %257 = arith.subf %254, %256 : vector<4x10xf32>
    %258 = arith.truncf %257 : vector<4x10xf32> to vector<4x10xbf16>
    %259 = arith.extf %258 : vector<4x10xbf16> to vector<4x10xf32>
    %260 = arith.subf %257, %259 : vector<4x10xf32>
    %261 = arith.truncf %260 : vector<4x10xf32> to vector<4x10xbf16>
    %cst_206 = arith.constant dense<0.000000e+00> : vector<4x4xf32>
    %262 = tpu.matmul %255, %27, %cst_206 {dimension_numbers = #tpu.dot_dimension_numbers<[1], [0], [0], [1], [0, 0, 1, 1], [], []>} : vector<4x10xbf16>, vector<10x4xbf16>, vector<4x4xf32> -> vector<4x4xf32>
    %cst_207 = arith.constant dense<0.000000e+00> : vector<4x4xf32>
    %263 = tpu.matmul %258, %27, %cst_207 {dimension_numbers = #tpu.dot_dimension_numbers<[1], [0], [0], [1], [0, 0, 1, 1], [], []>} : vector<4x10xbf16>, vector<10x4xbf16>, vector<4x4xf32> -> vector<4x4xf32>
    %264 = arith.addf %262, %263 : vector<4x4xf32>
    %cst_208 = arith.constant dense<0.000000e+00> : vector<4x4xf32>
    %265 = tpu.matmul %261, %27, %cst_208 {dimension_numbers = #tpu.dot_dimension_numbers<[1], [0], [0], [1], [0, 0, 1, 1], [], []>} : vector<4x10xbf16>, vector<10x4xbf16>, vector<4x4xf32> -> vector<4x4xf32>
    %266 = arith.addf %264, %265 : vector<4x4xf32>
    %cst_209 = arith.constant 0.111111112 : f32
    %267 = vector.broadcast %cst_209 : f32 to vector<4x4xf32>
    %268 = arith.mulf %266, %267 : vector<4x4xf32>
    %c0_210 = arith.constant 0 : index
    %c12 = arith.constant 12 : index
    %c0_211 = arith.constant 0 : index
    %269 = vector.load %arg2[%c0_210, %c12, %c0_211] : memref<1x16x4xf32, #tpu.memory_space<vmem>>, vector<1x4x4xf32>
    %270 = vector.shape_cast %269 : vector<1x4x4xf32> to vector<4x4xf32>
    %271 = vector.shape_cast %268 : vector<4x4xf32> to vector<1x4x4xf32>
    tpu.vector_store %arg2[%c0_210, %c12, %c0_211], %271 {strides = array<i32>} : memref<1x16x4xf32, #tpu.memory_space<vmem>>, vector<1x4x4xf32>,
    return
  }
  func.func @transform_0(%arg0: i32) -> (i32, i32, i32) {
    %c0_i32 = arith.constant 0 : i32
    %c0_i32_0 = arith.constant 0 : i32
    %c0_i32_1 = arith.constant 0 : i32
    return %arg0, %c0_i32, %c0_i32_0 : i32, i32, i32
  }
  func.func @transform_1(%arg0: i32) -> (i32, i32, i32) {
    %c0_i32 = arith.constant 0 : i32
    %c0_i32_0 = arith.constant 0 : i32
    %c0_i32_1 = arith.constant 0 : i32
    return %arg0, %c0_i32, %c0_i32_0 : i32, i32, i32
  }
}

</mosaic_0001>

<llo_original>
// kernel: input_projection_a.1
$region0: #{input_projection_a.1}
  #allocation0 [shape = 'u32[]', space=smem, size = 0x4, offset = 0x4, fixed_abs, tag = 'smem constant byte address 0x4 - core index']
  #allocation1 [shape = 'u32[144,128]{1,0:T(1,128)}', space=vmem, size = 0x12000, scoped, tag = 'internal scratch']
  #allocation2 [shape = 'f32[18,18]{1,0:T(8,128)}', space=vmem, size = 0x3000, scoped, tag = 'scratch operand']
  %s0 = inlined_call_operand.hbm [shape: f32[2,64,16], index: 0, kind: input, shape index: {}]
  %s1 = inlined_call_operand.hbm [shape: f32[2,16,4], index: 1, kind: output, shape index: {}]
  %s2 = sld [smem:[#allocation0]]
  $region41: #{input_projection_a.1} parent=0
    _
  %s4 = ssub.s32 1, %s2
  %s5 = scalar_select 0, %s4, %s2
  $region1: #{input_projection_a.1} parent=0
    #allocation3 [shape = 'u8[65536]{0}', space=vmem, size = 0x10000, scoped, tag = 'input window, operand 0']
    #allocation4 [shape = 's32[2]{0}', space=sflag, size = 0x8, scoped, tag = 'scoped memory for input_projection_a.1']
    #allocation5 [shape = 's32[2]{0}', space=sflag, size = 0x8, scoped, tag = 'scoped memory for input_projection_a.1']
    #allocation6 [shape = 'u8[16384]{0}', space=vmem, size = 0x4000, scoped, tag = 'output window, operand 0']
    %6 = vsyncpa [#allocation4], 0
    %s7 = scalar_lea.sflag [#allocation4], 1
    %8 = vsyncpa %s7, 0
    %9 = vsyncpa [#allocation5], 0
    %s10 = scalar_lea.sflag [#allocation5], 1
    %11 = vsyncpa %s10, 0
    loop: start=0, step=1, limit=4
    $region2: #{input_projection_a.1} parent=1 // loop_pre_header
      _
    $region3: #{input_projection_a.1} parent=1 // loop_header
      %s13 = sphi 0, %s17
      %p14 = scmp.ge.s32.totalorder %s13, 4
      %s23 = sphi 0, %s25
      %s26 = sphi 0, %s23
      %s27 = sphi 0, %s26
      %s43 = sphi 0, %s27
      %s49 = sphi 0, %s51
      %s52 = sphi 0, %s49
      %s53 = sphi 0, %s52
      %s69 = sphi 0, %s53
    $region4: #{input_projection_a.1} parent=1 // loop_header_branch
      %16 = sbr.rel (%p14) target = $region8
    $region5: #{input_projection_a.1} parent=1 // loop_body
      %s18 = ssub.s32 %s13, 1
      %s19 = ssub.s32 %s13, 2
      %s20 = sadd.s32 %s13, 1
      %s21 = ssub.s32 %s13, %s20
      %p22 = scmp.eq.s32.totalorder %s21, 0
      %s24 = sadd.s32 %s23, 1
      %s25 = scalar_select %p22, %s23, %s24
      %p28 = pneg %p22
      %p29 = scmp.eq.s32.totalorder %s13, 1
      %p30 = por %p28, %p29
      %p31 = scmp.ne.s32.totalorder %s23, %s26
      %p32 = scmp.eq.s32.totalorder %s13, 0
      %p33 = por %p31, %p32
      %p34 = scmp.ne.s32.totalorder %s23, %s26
      %p35 = scmp.eq.s32.totalorder %s18, 1
      %p36 = por %p34, %p35
      %p37 = scmp.ne.s32.totalorder %s26, %s27
      %p38 = scmp.eq.s32.totalorder %s18, 0
      %p39 = por %p37, %p38
      %p40 = scmp.ne.s32.totalorder %s26, %s27
      %p41 = scmp.eq.s32.totalorder %s19, 1
      %p42 = por %p40, %p41
      %p44 = scmp.ne.s32.totalorder %s27, %s43
      %p45 = scmp.eq.s32.totalorder %s19, 0
      %p46 = por %p44, %p45
      %s47 = ssub.s32 %s13, %s20
      %p48 = scmp.eq.s32.totalorder %s47, 0
      %s50 = sadd.s32 %s49, 1
      %s51 = scalar_select %p48, %s49, %s50
      %p54 = pneg %p48
      %p55 = scmp.eq.s32.totalorder %s13, 1
      %p56 = por %p54, %p55
      %p57 = scmp.ne.s32.totalorder %s49, %s52
      %p58 = scmp.eq.s32.totalorder %s13, 0
      %p59 = por %p57, %p58
      %p60 = scmp.ne.s32.totalorder %s49, %s52
      %p61 = scmp.eq.s32.totalorder %s18, 1
      %p62 = por %p60, %p61
      %p63 = scmp.ne.s32.totalorder %s52, %s53
      %p64 = scmp.eq.s32.totalorder %s18, 0
      %p65 = por %p63, %p64
      %p66 = scmp.ne.s32.totalorder %s52, %s53
      %p67 = scmp.eq.s32.totalorder %s19, 1
      %p68 = por %p66, %p67
      %p70 = scmp.ne.s32.totalorder %s53, %s69
      %p71 = scmp.eq.s32.totalorder %s19, 0
      %p72 = por %p70, %p71
      %p73 = scmp.le.s32.totalorder 1, %s13
      %p74 = scmp.lt.s32.totalorder %s13, 3
      %p75 = pnand %p73, %p74
      %p76 = pneg %p75
      // Predicated region
      $region9: #{input_projection_a.1} parent=5 // pred_check
        _
      $region10: #{input_projection_a.1} parent=5 // pred_check_branch
        %78 = sbr.rel (%p75) target = $region12
      $region11: #{input_projection_a.1} parent=5 // pred_region
        %s79 = ssub.s32 %s13, 1
      $region12: #{input_projection_a.1} parent=5 // pred_fallthru
        _
      %p80 = scmp.lt.s32.totalorder %s13, 2
      // Predicated region
      $region13: #{input_projection_a.1} parent=5 // pred_check
        %p81 = pneg %p80
      $region14: #{input_projection_a.1} parent=5 // pred_check_branch
        %83 = sbr.rel (%p81) target = $region16
      $region15: #{input_projection_a.1} parent=5 // pred_region
        // Predicated region
        $region17: #{input_projection_a.1} parent=15 // pred_check
          %p84 = pneg %p33
        $region18: #{input_projection_a.1} parent=15 // pred_check_branch
          %86 = sbr.rel (%p84) target = $region20
        $region19: #{input_projection_a.1} parent=15 // pred_region
          %s87 = sand.u32 %s23, 1
          %s88 = scalar_lea.sflag [#allocation4], %s87
          %s89 = sand.u32 %s23, 1
          %s90 = smul.addr %s89, 64
          %s91 = scalar_lea.vmem [#allocation3], %s90
          %s93 = ssub.s32 1024, 1024
          %94 = vsyncadd %s88, %s93
          %s95 = smul.addr %s13, 8
          %s96 = smul.addr %s95, 128
          %s97 = scalar_lea.hbm %s0, %s96
          %s98 = sshll.u32 %s91, 4
          %s99 = int_to_ptr.vmem [resolvable:$true] %s98
          %104 = dma.hbm_to_vmem [thread:$0]  %s97, 1024, %s99, %s88, 128, 128, 8
        $region20: #{input_projection_a.1} parent=15 // pred_fallthru
          _
      $region16: #{input_projection_a.1} parent=5 // pred_fallthru
        _
      %p105 = scmp.le.s32.totalorder 1, %s13
      %p106 = scmp.lt.s32.totalorder %s13, 3
      %p107 = pnand %p105, %p106
      %p108 = pneg %p107
      // Predicated region
      $region21: #{input_projection_a.1} parent=5 // pred_check
        _
      $region22: #{input_projection_a.1} parent=5 // pred_check_branch
        %110 = sbr.rel (%p107) target = $region24
      $region23: #{input_projection_a.1} parent=5 // pred_region
        %s111 = ssub.s32 %s13, 1
        %s112 = sand.u32 %s26, 1
        %s113 = scalar_lea.sflag [#allocation4], %s112
        %s114 = sand.u32 %s26, 1
        %s115 = smul.addr %s114, 64
        %s116 = scalar_lea.vmem [#allocation3], %s115
        // Predicated region
        $region25: #{input_projection_a.1} parent=23 // pred_check
          %p117 = pneg %p39
        $region26: #{input_projection_a.1} parent=23 // pred_check_branch
          %119 = sbr.rel (%p117) target = $region28
        $region27: #{input_projection_a.1} parent=23 // pred_region
          %120 = dma.done %s113, 1024
        $region28: #{input_projection_a.1} parent=23 // pred_fallthru
          _
        %s121 = sand.u32 %s26, 1
        %s122 = scalar_lea.sflag [#allocation4], %s121
        %s123 = sand.u32 %s26, 1
        %s124 = smul.addr %s123, 64
        %s125 = scalar_lea.vmem [#allocation3], %s124
        %p126 = pneg %p39
        %p127 = pneg %p36
        %p128 = pneg %p65
        %p129 = pneg %p62
        %s130 = sand.u32 %s52, 1
        %s131 = scalar_lea.sflag [#allocation5], %s130
        %s132 = sand.u32 %s52, 1
        %s133 = smul.addr %s132, 16
        %s134 = scalar_lea.vmem [#allocation6], %s133
        %v136 = vlaneseq
        %v137 = vshrl.u32 %v136, 7
        %v138 = vadd.s32 %v137, 8
        %v139 = vadd.s32 %v137, 16
        %v140 = vlaneseq
        %v141 = vand.u32 %v140, 127
        %v142 = vmul.u32 %v141, 2
        %v143 = vsub.s32 %v137, %v142
        %v144 = vsub.s32 %v138, %v142
        %v145 = vsub.s32 %v139, %v142
        %vm146 = vcmp.ge.s32.totalorder %v143, 0
        %vm147 = vcmp.ge.s32.totalorder %v144, 0
        %vm148 = vcmp.ge.s32.totalorder %v145, 0
        %vm149 = vcmp.le.s32.totalorder %v143, 2
        %vm150 = vcmp.le.s32.totalorder %v144, 2
        %vm151 = vcmp.le.s32.totalorder %v145, 2
        %vm152 = vmand %vm146, %vm149
        %vm153 = vmand %vm147, %vm150
        %vm154 = vmand %vm148, %vm151
        %v155 = vsel %vm152, 1.0, 0.0
        %v156 = vsel %vm153, 1.0, 0.0
        %v157 = vsel %vm154, 1.0, 0.0
        %v158 = vpack.c.bf16 %v156, %v155
        %v159 = vpack.c.bf16 %v157, %v157
        %v160 = vld [vmem:[%s116] sm:$0xff]
        %v161 = vld [vmem:[%s116 + $0x8] sm:$0xff]
        %vm162 = vcmask 139264
        %163 = vst.msk [vmem:[#allocation2] sm:$0x1] %vm162, 0.0
        %164 = vst.msk [vmem:[#allocation2 + $0x11] sm:$0x1] %vm162, 0.0
        %vm165 = vcmask 7168
        %166 = vst.msk [vmem:[#allocation2 + $0x1] sm:$0xff] %vm165, 0.0
        %167 = vst.msk [vmem:[#allocation2 + $0x9] sm:$0xff] %vm165, 0.0
        %vm168 = vcmask 146568
        %169 = vst.msk [vmem:[#allocation2 + $0x1] sm:$0xff] %vm168, 0.0
        %170 = vst.msk [vmem:[#allocation2 + $0x9] sm:$0xff] %vm168, 0.0
        %173 = vrot.lane.b32.xlu0 %v160, 1
        %v174 = vpop.permute.xlu0 %173
        %175 = vrot.lane.b32.xlu0 %v161, 1
        %v176 = vpop.permute.xlu0 %175
        %vm179 = vcmask 138248
        %180 = vst.msk [vmem:[#allocation2 + $0x1] sm:$0xff] %vm179, %v174
        %181 = vst.msk [vmem:[#allocation2 + $0x9] sm:$0xff] %vm179, %v176
        %v182 = vld [vmem:[#allocation2] ss:$2 sm:$0xff]
        %s183 = scalar_lea.vmem [#allocation2], 1
        %v184 = vld [vmem:[%s183] ss:$2 sm:$0xff]
        %v185 = vadd.f32 %v182, %v184
        %s186 = scalar_lea.vmem [#allocation2], 2
        %v187 = vld [vmem:[%s186] ss:$2 sm:$0xff]
        %v188 = vadd.f32 %v185, %v187
        %v189 = vpack.c.bf16 %v188, %v188
        %v190 = vunpack.c.l.bf16 %v189
        %v191 = vsub.f32 %v188, %v190
        %v192 = vpack.c.bf16 %v191, %v191
        %v193 = vunpack.c.l.bf16 %v192
        %v194 = vsub.f32 %v191, %v193
        %v195 = vpack.c.bf16 %v194, %v194
        %vm196 = vcmask 146432
        %v198 = vsel %vm196, %v192, 0
        %vm200 = vcmask 1040384
        %v202 = vsel %vm200, %v159, 0
        %204 = vmatprep.subr.bf16.mxu0 0
        %205 = vmatpush1.bf16.msra.mxu0 %v158
        %206 = vmatprep.subr.bf16.mxu0 0
        %207 = vmatpush1.bf16.msra.mxu0 %v202
        %208 = vmatprep.subr.bf16.mxu0 0
        %209 = vmatpush1.bf16.msra.mxu0 0
        %210 = vmatprep.subr.bf16.mxu0 0
        %211 = vmatpush1.bf16.msra.mxu0 0
        %212 = vmatprep.subr.bf16.mxu0 0
        %213 = vmatpush1.bf16.msra.mxu0 0
        %214 = vmatprep.subr.bf16.mxu0 0
        %215 = vmatpush1.bf16.msra.mxu0 0
        %216 = vmatprep.subr.bf16.mxu0 0
        %217 = vmatpush1.bf16.msra.mxu0 0
        %218 = vmatprep.subr.bf16.mxu0 0
        %219 = vmatpush1.bf16.msra.mxu0 0
        %220 = vmatprep.subr.bf16.mxu0 0
        %221 = vmatpush1.bf16.msra.mxu0 0
        %222 = vmatprep.subr.bf16.mxu0 0
        %223 = vmatpush1.bf16.msra.mxu0 0
        %224 = vmatprep.subr.bf16.mxu0 0
        %225 = vmatpush1.bf16.msra.mxu0 0
        %226 = vmatprep.subr.bf16.mxu0 0
        %227 = vmatpush1.bf16.msra.mxu0 0
        %228 = vmatprep.subr.bf16.mxu0 0
        %229 = vmatpush1.bf16.msra.mxu0 0
        %230 = vmatprep.subr.bf16.mxu0 0
        %231 = vmatpush1.bf16.msra.mxu0 0
        %232 = vmatprep.subr.bf16.mxu0 0
        %233 = vmatpush1.bf16.msra.mxu0 0
        %234 = vmatprep.subr.bf16.mxu0 0
        %235 = vmatpush1.bf16.msra.mxu0 0
        %236 = vmatprep.mubr.bf16.mxu0 0
        %237 = vmatmul.mubr.bf16.gmra.mrb[0].mxu0 %v198
        %v238 = vpop.f32.mrb[0].mxu0
        %v239 = vadd.f32 0.0, %v238
        %v240 = vpop.f32.mrb[0].mxu0
        %v241 = vpop.f32.mrb[0].mxu0
        %v242 = vpop.f32.mrb[0].mxu0
        %243 = vdwg.mxu0
        %v245 = vsel %vm196, %v189, 0
        %247 = vmatprep.subr.bf16.mxu0 0
        %248 = vmatpush1.bf16.msra.mxu0 %v158
        %249 = vmatprep.subr.bf16.mxu0 0
        %250 = vmatpush1.bf16.msra.mxu0 %v202
        %251 = vmatprep.subr.bf16.mxu0 0
        %252 = vmatpush1.bf16.msra.mxu0 0
        %253 = vmatprep.subr.bf16.mxu0 0
        %254 = vmatpush1.bf16.msra.mxu0 0
        %255 = vmatprep.subr.bf16.mxu0 0
        %256 = vmatpush1.bf16.msra.mxu0 0
        %257 = vmatprep.subr.bf16.mxu0 0
        %258 = vmatpush1.bf16.msra.mxu0 0
        %259 = vmatprep.subr.bf16.mxu0 0
        %260 = vmatpush1.bf16.msra.mxu0 0
        %261 = vmatprep.subr.bf16.mxu0 0
        %262 = vmatpush1.bf16.msra.mxu0 0
        %263 = vmatprep.subr.bf16.mxu0 0
        %264 = vmatpush1.bf16.msra.mxu0 0
        %265 = vmatprep.subr.bf16.mxu0 0
        %266 = vmatpush1.bf16.msra.mxu0 0
        %267 = vmatprep.subr.bf16.mxu0 0
        %268 = vmatpush1.bf16.msra.mxu0 0
        %269 = vmatprep.subr.bf16.mxu0 0
        %270 = vmatpush1.bf16.msra.mxu0 0
        %271 = vmatprep.subr.bf16.mxu0 0
        %272 = vmatpush1.bf16.msra.mxu0 0
        %273 = vmatprep.subr.bf16.mxu0 0
        %274 = vmatpush1.bf16.msra.mxu0 0
        %275 = vmatprep.subr.bf16.mxu0 0
        %276 = vmatpush1.bf16.msra.mxu0 0
        %277 = vmatprep.subr.bf16.mxu0 0
        %278 = vmatpush1.bf16.msra.mxu0 0
        %279 = vmatprep.mubr.bf16.mxu0 0
        %280 = vmatmul.mubr.bf16.gmra.mrb[0].mxu0 %v245
        %v281 = vpop.f32.mrb[0].mxu0
        %v282 = vadd.f32 %v239, %v281
        %v283 = vpop.f32.mrb[0].mxu0
        %v284 = vpop.f32.mrb[0].mxu0
        %v285 = vpop.f32.mrb[0].mxu0
        %286 = vdwg.mxu0
        %v288 = vsel %vm196, %v195, 0
        %290 = vmatprep.subr.bf16.mxu0 0
        %291 = vmatpush1.bf16.msra.mxu0 %v158
        %292 = vmatprep.subr.bf16.mxu0 0
        %293 = vmatpush1.bf16.msra.mxu0 %v202
        %294 = vmatprep.subr.bf16.mxu0 0
        %295 = vmatpush1.bf16.msra.mxu0 0
        %296 = vmatprep.subr.bf16.mxu0 0
        %297 = vmatpush1.bf16.msra.mxu0 0
        %298 = vmatprep.subr.bf16.mxu0 0
        %299 = vmatpush1.bf16.msra.mxu0 0
        %300 = vmatprep.subr.bf16.mxu0 0
        %301 = vmatpush1.bf16.msra.mxu0 0
        %302 = vmatprep.subr.bf16.mxu0 0
        %303 = vmatpush1.bf16.msra.mxu0 0
        %304 = vmatprep.subr.bf16.mxu0 0
        %305 = vmatpush1.bf16.msra.mxu0 0
        %306 = vmatprep.subr.bf16.mxu0 0
        %307 = vmatpush1.bf16.msra.mxu0 0
        %308 = vmatprep.subr.bf16.mxu0 0
        %309 = vmatpush1.bf16.msra.mxu0 0
        %310 = vmatprep.subr.bf16.mxu0 0
        %311 = vmatpush1.bf16.msra.mxu0 0
        %312 = vmatprep.subr.bf16.mxu0 0
        %313 = vmatpush1.bf16.msra.mxu0 0
        %314 = vmatprep.subr.bf16.mxu0 0
        %315 = vmatpush1.bf16.msra.mxu0 0
        %316 = vmatprep.subr.bf16.mxu0 0
        %317 = vmatpush1.bf16.msra.mxu0 0
        %318 = vmatprep.subr.bf16.mxu0 0
        %319 = vmatpush1.bf16.msra.mxu0 0
        %320 = vmatprep.subr.bf16.mxu0 0
        %321 = vmatpush1.bf16.msra.mxu0 0
        %322 = vmatprep.mubr.bf16.mxu0 0
        %323 = vmatmul.mubr.bf16.gmra.mrb[0].mxu0 %v288
        %v324 = vpop.f32.mrb[0].mxu0
        %v325 = vadd.f32 0.0, %v324
        %v326 = vpop.f32.mrb[0].mxu0
        %v327 = vpop.f32.mrb[0].mxu0
        %v328 = vpop.f32.mrb[0].mxu0
        %329 = vdwg.mxu0
        %v330 = vadd.f32 %v282, %v325
        %v331 = vmul.f32 %v330, 0.11111111
        %vm332 = vcmask 73728
        %333 = vst.msk [vmem:[#allocation2] sm:$0x1] %vm332, 0.0
        %334 = vst.msk [vmem:[#allocation2 + $0x9] sm:$0x1] %vm332, 0.0
        %335 = vst.msk [vmem:[#allocation2 + $0x1] sm:$0xff] %vm165, 0.0
        %vm336 = vcmask 80968
        %337 = vst.msk [vmem:[#allocation2 + $0x1] sm:$0xff] %vm336, 0.0
        %339 = vrot.lane.b32.xlu0 %v331, 1
        %v340 = vpop.permute.xlu0 %339
        %vm342 = vcmask 72712
        %343 = vst.msk [vmem:[#allocation2 + $0x1] sm:$0xff] %vm342, %v340
        %v344 = vld [vmem:[#allocation2] ss:$2 sm:$0xf]
        %v345 = vld [vmem:[%s183] ss:$2 sm:$0xf]
        %v346 = vadd.f32 %v344, %v345
        %v347 = vld [vmem:[%s186] ss:$2 sm:$0xf]
        %v348 = vadd.f32 %v346, %v347
        %v349 = vpack.c.bf16 %v348, %v348
        %v350 = vunpack.c.l.bf16 %v349
        %v351 = vsub.f32 %v348, %v350
        %v352 = vpack.c.bf16 %v351, %v351
        %v353 = vunpack.c.l.bf16 %v352
        %v354 = vsub.f32 %v351, %v353
        %v355 = vpack.c.bf16 %v354, %v354
        %vm356 = vcmask 80896
        %v358 = vsel %vm356, %v352, 0
        %vm360 = vcmask 1044480
        %v362 = vsel %vm360, %v158, 0
        %364 = vmatprep.subr.bf16.mxu0 0
        %365 = vmatpush1.bf16.msra.mxu0 %v362
        %366 = vmatprep.subr.bf16.mxu0 0
        %367 = vmatpush1.bf16.msra.mxu0 0
        %368 = vmatprep.subr.bf16.mxu0 0
        %369 = vmatpush1.bf16.msra.mxu0 0
        %370 = vmatprep.subr.bf16.mxu0 0
        %371 = vmatpush1.bf16.msra.mxu0 0
        %372 = vmatprep.subr.bf16.mxu0 0
        %373 = vmatpush1.bf16.msra.mxu0 0
        %374 = vmatprep.subr.bf16.mxu0 0
        %375 = vmatpush1.bf16.msra.mxu0 0
        %376 = vmatprep.subr.bf16.mxu0 0
        %377 = vmatpush1.bf16.msra.mxu0 0
        %378 = vmatprep.subr.bf16.mxu0 0
        %379 = vmatpush1.bf16.msra.mxu0 0
        %380 = vmatprep.subr.bf16.mxu0 0
        %381 = vmatpush1.bf16.msra.mxu0 0
        %382 = vmatprep.subr.bf16.mxu0 0
        %383 = vmatpush1.bf16.msra.mxu0 0
        %384 = vmatprep.subr.bf16.mxu0 0
        %385 = vmatpush1.bf16.msra.mxu0 0
        %386 = vmatprep.subr.bf16.mxu0 0
        %387 = vmatpush1.bf16.msra.mxu0 0
        %388 = vmatprep.subr.bf16.mxu0 0
        %389 = vmatpush1.bf16.msra.mxu0 0
        %390 = vmatprep.subr.bf16.mxu0 0
        %391 = vmatpush1.bf16.msra.mxu0 0
        %392 = vmatprep.subr.bf16.mxu0 0
        %393 = vmatpush1.bf16.msra.mxu0 0
        %394 = vmatprep.subr.bf16.mxu0 0
        %395 = vmatpush1.bf16.msra.mxu0 0
        %396 = vmatprep.mubr.bf16.mxu0 0
        %397 = vmatmul.mubr.bf16.gmra.mrb[0].mxu0 %v358
        %v398 = vpop.f32.mrb[0].mxu0
        %v399 = vadd.f32 0.0, %v398
        %v400 = vpop.f32.mrb[0].mxu0
        %v401 = vpop.f32.mrb[0].mxu0
        %v402 = vpop.f32.mrb[0].mxu0
        %403 = vdwg.mxu0
        %v405 = vsel %vm356, %v349, 0
        %407 = vmatprep.subr.bf16.mxu0 0
        %408 = vmatpush1.bf16.msra.mxu0 %v362
        %409 = vmatprep.subr.bf16.mxu0 0
        %410 = vmatpush1.bf16.msra.mxu0 0
        %411 = vmatprep.subr.bf16.mxu0 0
        %412 = vmatpush1.bf16.msra.mxu0 0
        %413 = vmatprep.subr.bf16.mxu0 0
        %414 = vmatpush1.bf16.msra.mxu0 0
        %415 = vmatprep.subr.bf16.mxu0 0
        %416 = vmatpush1.bf16.msra.mxu0 0
        %417 = vmatprep.subr.bf16.mxu0 0
        %418 = vmatpush1.bf16.msra.mxu0 0
        %419 = vmatprep.subr.bf16.mxu0 0
        %420 = vmatpush1.bf16.msra.mxu0 0
        %421 = vmatprep.subr.bf16.mxu0 0
        %422 = vmatpush1.bf16.msra.mxu0 0
        %423 = vmatprep.subr.bf16.mxu0 0
        %424 = vmatpush1.bf16.msra.mxu0 0
        %425 = vmatprep.subr.bf16.mxu0 0
        %426 = vmatpush1.bf16.msra.mxu0 0
        %427 = vmatprep.subr.bf16.mxu0 0
        %428 = vmatpush1.bf16.msra.mxu0 0
        %429 = vmatprep.subr.bf16.mxu0 0
        %430 = vmatpush1.bf16.msra.mxu0 0
        %431 = vmatprep.subr.bf16.mxu0 0
        %432 = vmatpush1.bf16.msra.mxu0 0
        %433 = vmatprep.subr.bf16.mxu0 0
        %434 = vmatpush1.bf16.msra.mxu0 0
        %435 = vmatprep.subr.bf16.mxu0 0
        %436 = vmatpush1.bf16.msra.mxu0 0
        %437 = vmatprep.subr.bf16.mxu0 0
        %438 = vmatpush1.bf16.msra.mxu0 0
        %439 = vmatprep.mubr.bf16.mxu0 0
        %440 = vmatmul.mubr.bf16.gmra.mrb[0].mxu0 %v405
        %v441 = vpop.f32.mrb[0].mxu0
        %v442 = vadd.f32 %v399, %v441
        %v443 = vpop.f32.mrb[0].mxu0
        %v444 = vpop.f32.mrb[0].mxu0
        %v445 = vpop.f32.mrb[0].mxu0
        %446 = vdwg.mxu0
        %v448 = vsel %vm356, %v355, 0
        %450 = vmatprep.subr.bf16.mxu0 0
        %451 = vmatpush1.bf16.msra.mxu0 %v362
        %452 = vmatprep.subr.bf16.mxu0 0
        %453 = vmatpush1.bf16.msra.mxu0 0
        %454 = vmatprep.subr.bf16.mxu0 0
        %455 = vmatpush1.bf16.msra.mxu0 0
        %456 = vmatprep.subr.bf16.mxu0 0
        %457 = vmatpush1.bf16.msra.mxu0 0
        %458 = vmatprep.subr.bf16.mxu0 0
        %459 = vmatpush1.bf16.msra.mxu0 0
        %460 = vmatprep.subr.bf16.mxu0 0
        %461 = vmatpush1.bf16.msra.mxu0 0
        %462 = vmatprep.subr.bf16.mxu0 0
        %463 = vmatpush1.bf16.msra.mxu0 0
        %464 = vmatprep.subr.bf16.mxu0 0
        %465 = vmatpush1.bf16.msra.mxu0 0
        %466 = vmatprep.subr.bf16.mxu0 0
        %467 = vmatpush1.bf16.msra.mxu0 0
        %468 = vmatprep.subr.bf16.mxu0 0
        %469 = vmatpush1.bf16.msra.mxu0 0
        %470 = vmatprep.subr.bf16.mxu0 0
        %471 = vmatpush1.bf16.msra.mxu0 0
        %472 = vmatprep.subr.bf16.mxu0 0
        %473 = vmatpush1.bf16.msra.mxu0 0
        %474 = vmatprep.subr.bf16.mxu0 0
        %475 = vmatpush1.bf16.msra.mxu0 0
        %476 = vmatprep.subr.bf16.mxu0 0
        %477 = vmatpush1.bf16.msra.mxu0 0
        %478 = vmatprep.subr.bf16.mxu0 0
        %479 = vmatpush1.bf16.msra.mxu0 0
        %480 = vmatprep.subr.bf16.mxu0 0
        %481 = vmatpush1.bf16.msra.mxu0 0
        %482 = vmatprep.mubr.bf16.mxu0 0
        %483 = vmatmul.mubr.bf16.gmra.mrb[0].mxu0 %v448
        %v484 = vpop.f32.mrb[0].mxu0
        %v485 = vadd.f32 0.0, %v484
        %v486 = vpop.f32.mrb[0].mxu0
        %v487 = vpop.f32.mrb[0].mxu0
        %v488 = vpop.f32.mrb[0].mxu0
        %489 = vdwg.mxu0
        %v490 = vadd.f32 %v442, %v485
        %v491 = vmul.f32 %v490, 0.11111111
        %vm492 = vcmask 27648
        %493 = vst.msk [vmem:[%s134] sm:$0xf] %vm492, %v491
        %v494 = vld [vmem:[%s116 + $0x10] sm:$0xff]
        %v495 = vld [vmem:[%s116 + $0x18] sm:$0xff]
        %496 = vst.msk [vmem:[#allocation2] sm:$0x1] %vm162, 0.0
        %497 = vst.msk [vmem:[#allocation2 + $0x11] sm:$0x1] %vm162, 0.0
        %498 = vst.msk [vmem:[#allocation2 + $0x1] sm:$0xff] %vm165, 0.0
        %499 = vst.msk [vmem:[#allocation2 + $0x9] sm:$0xff] %vm165, 0.0
        %500 = vst.msk [vmem:[#allocation2 + $0x1] sm:$0xff] %vm168, 0.0
        %501 = vst.msk [vmem:[#allocation2 + $0x9] sm:$0xff] %vm168, 0.0
        %504 = vrot.lane.b32.xlu0 %v494, 1
        %v505 = vpop.permute.xlu0 %504
        %506 = vrot.lane.b32.xlu0 %v495, 1
        %v507 = vpop.permute.xlu0 %506
        %510 = vst.msk [vmem:[#allocation2 + $0x1] sm:$0xff] %vm179, %v505
        %511 = vst.msk [vmem:[#allocation2 + $0x9] sm:$0xff] %vm179, %v507
        %v512 = vld [vmem:[#allocation2] ss:$2 sm:$0xff]
        %v513 = vld [vmem:[%s183] ss:$2 sm:$0xff]
        %v514 = vadd.f32 %v512, %v513
        %v515 = vld [vmem:[%s186] ss:$2 sm:$0xff]
        %v516 = vadd.f32 %v514, %v515
        %v517 = vpack.c.bf16 %v516, %v516
        %v518 = vunpack.c.l.bf16 %v517
        %v519 = vsub.f32 %v516, %v518
        %v520 = vpack.c.bf16 %v519, %v519
        %v521 = vunpack.c.l.bf16 %v520
        %v522 = vsub.f32 %v519, %v521
        %v523 = vpack.c.bf16 %v522, %v522
        %v525 = vsel %vm196, %v520, 0
        %527 = vmatprep.subr.bf16.mxu0 0
        %528 = vmatpush1.bf16.msra.mxu0 %v158
        %529 = vmatprep.subr.bf16.mxu0 0
        %530 = vmatpush1.bf16.msra.mxu0 %v202
        %531 = vmatprep.subr.bf16.mxu0 0
        %532 = vmatpush1.bf16.msra.mxu0 0
        %533 = vmatprep.subr.bf16.mxu0 0
        %534 = vmatpush1.bf16.msra.mxu0 0
        %535 = vmatprep.subr.bf16.mxu0 0
        %536 = vmatpush1.bf16.msra.mxu0 0
        %537 = vmatprep.subr.bf16.mxu0 0
        %538 = vmatpush1.bf16.msra.mxu0 0
        %539 = vmatprep.subr.bf16.mxu0 0
        %540 = vmatpush1.bf16.msra.mxu0 0
        %541 = vmatprep.subr.bf16.mxu0 0
        %542 = vmatpush1.bf16.msra.mxu0 0
        %543 = vmatprep.subr.bf16.mxu0 0
        %544 = vmatpush1.bf16.msra.mxu0 0
        %545 = vmatprep.subr.bf16.mxu0 0
        %546 = vmatpush1.bf16.msra.mxu0 0
        %547 = vmatprep.subr.bf16.mxu0 0
        %548 = vmatpush1.bf16.msra.mxu0 0
        %549 = vmatprep.subr.bf16.mxu0 0
        %550 = vmatpush1.bf16.msra.mxu0 0
        %551 = vmatprep.subr.bf16.mxu0 0
        %552 = vmatpush1.bf16.msra.mxu0 0
        %553 = vmatprep.subr.bf16.mxu0 0
        %554 = vmatpush1.bf16.msra.mxu0 0
        %555 = vmatprep.subr.bf16.mxu0 0
        %556 = vmatpush1.bf16.msra.mxu0 0
        %557 = vmatprep.subr.bf16.mxu0 0
        %558 = vmatpush1.bf16.msra.mxu0 0
        %559 = vmatprep.mubr.bf16.mxu0 0
        %560 = vmatmul.mubr.bf16.gmra.mrb[0].mxu0 %v525
        %v561 = vpop.f32.mrb[0].mxu0
        %v562 = vadd.f32 0.0, %v561
        %v563 = vpop.f32.mrb[0].mxu0
        %v564 = vpop.f32.mrb[0].mxu0
        %v565 = vpop.f32.mrb[0].mxu0
        %566 = vdwg.mxu0
        %v568 = vsel %vm196, %v517, 0
        %570 = vmatprep.subr.bf16.mxu0 0
        %571 = vmatpush1.bf16.msra.mxu0 %v158
        %572 = vmatprep.subr.bf16.mxu0 0
        %573 = vmatpush1.bf16.msra.mxu0 %v202
        %574 = vmatprep.subr.bf16.mxu0 0
        %575 = vmatpush1.bf16.msra.mxu0 0
        %576 = vmatprep.subr.bf16.mxu0 0
        %577 = vmatpush1.bf16.msra.mxu0 0
        %578 = vmatprep.subr.bf16.mxu0 0
        %579 = vmatpush1.bf16.msra.mxu0 0
        %580 = vmatprep.subr.bf16.mxu0 0
        %581 = vmatpush1.bf16.msra.mxu0 0
        %582 = vmatprep.subr.bf16.mxu0 0
        %583 = vmatpush1.bf16.msra.mxu0 0
        %584 = vmatprep.subr.bf16.mxu0 0
        %585 = vmatpush1.bf16.msra.mxu0 0
        %586 = vmatprep.subr.bf16.mxu0 0
        %587 = vmatpush1.bf16.msra.mxu0 0
        %588 = vmatprep.subr.bf16.mxu0 0
        %589 = vmatpush1.bf16.msra.mxu0 0
        %590 = vmatprep.subr.bf16.mxu0 0
        %591 = vmatpush1.bf16.msra.mxu0 0
        %592 = vmatprep.subr.bf16.mxu0 0
        %593 = vmatpush1.bf16.msra.mxu0 0
        %594 = vmatprep.subr.bf16.mxu0 0
        %595 = vmatpush1.bf16.msra.mxu0 0
        %596 = vmatprep.subr.bf16.mxu0 0
        %597 = vmatpush1.bf16.msra.mxu0 0
        %598 = vmatprep.subr.bf16.mxu0 0
        %599 = vmatpush1.bf16.msra.mxu0 0
        %600 = vmatprep.subr.bf16.mxu0 0
        %601 = vmatpush1.bf16.msra.mxu0 0
        %602 = vmatprep.mubr.bf16.mxu0 0
        %603 = vmatmul.mubr.bf16.gmra.mrb[0].mxu0 %v568
        %v604 = vpop.f32.mrb[0].mxu0
        %v605 = vadd.f32 %v562, %v604
        %v606 = vpop.f32.mrb[0].mxu0
        %v607 = vpop.f32.mrb[0].mxu0
        %v608 = vpop.f32.mrb[0].mxu0
        %609 = vdwg.mxu0
        %v611 = vsel %vm196, %v523, 0
        %613 = vmatprep.subr.bf16.mxu0 0
        %614 = vmatpush1.bf16.msra.mxu0 %v158
        %615 = vmatprep.subr.bf16.mxu0 0
        %616 = vmatpush1.bf16.msra.mxu0 %v202
        %617 = vmatprep.subr.bf16.mxu0 0
        %618 = vmatpush1.bf16.msra.mxu0 0
        %619 = vmatprep.subr.bf16.mxu0 0
        %620 = vmatpush1.bf16.msra.mxu0 0
        %621 = vmatprep.subr.bf16.mxu0 0
        %622 = vmatpush1.bf16.msra.mxu0 0
        %623 = vmatprep.subr.bf16.mxu0 0
        %624 = vmatpush1.bf16.msra.mxu0 0
        %625 = vmatprep.subr.bf16.mxu0 0
        %626 = vmatpush1.bf16.msra.mxu0 0
        %627 = vmatprep.subr.bf16.mxu0 0
        %628 = vmatpush1.bf16.msra.mxu0 0
        %629 = vmatprep.subr.bf16.mxu0 0
        %630 = vmatpush1.bf16.msra.mxu0 0
        %631 = vmatprep.subr.bf16.mxu0 0
        %632 = vmatpush1.bf16.msra.mxu0 0
        %633 = vmatprep.subr.bf16.mxu0 0
        %634 = vmatpush1.bf16.msra.mxu0 0
        %635 = vmatprep.subr.bf16.mxu0 0
        %636 = vmatpush1.bf16.msra.mxu0 0
        %637 = vmatprep.subr.bf16.mxu0 0
        %638 = vmatpush1.bf16.msra.mxu0 0
        %639 = vmatprep.subr.bf16.mxu0 0
        %640 = vmatpush1.bf16.msra.mxu0 0
        %641 = vmatprep.subr.bf16.mxu0 0
        %642 = vmatpush1.bf16.msra.mxu0 0
        %643 = vmatprep.subr.bf16.mxu0 0
        %644 = vmatpush1.bf16.msra.mxu0 0
        %645 = vmatprep.mubr.bf16.mxu0 0
        %646 = vmatmul.mubr.bf16.gmra.mrb[0].mxu0 %v611
        %v647 = vpop.f32.mrb[0].mxu0
        %v648 = vadd.f32 0.0, %v647
        %v649 = vpop.f32.mrb[0].mxu0
        %v650 = vpop.f32.mrb[0].mxu0
        %v651 = vpop.f32.mrb[0].mxu0
        %652 = vdwg.mxu0
        %v653 = vadd.f32 %v605, %v648
        %v654 = vmul.f32 %v653, 0.11111111
        %655 = vst.msk [vmem:[#allocation2] sm:$0x1] %vm332, 0.0
        %656 = vst.msk [vmem:[#allocation2 + $0x9] sm:$0x1] %vm332, 0.0
        %657 = vst.msk [vmem:[#allocation2 + $0x1] sm:$0xff] %vm165, 0.0
        %658 = vst.msk [vmem:[#allocation2 + $0x1] sm:$0xff] %vm336, 0.0
        %660 = vrot.lane.b32.xlu0 %v654, 1
        %v661 = vpop.permute.xlu0 %660
        %663 = vst.msk [vmem:[#allocation2 + $0x1] sm:$0xff] %vm342, %v661
        %v664 = vld [vmem:[#allocation2] ss:$2 sm:$0xf]
        %v665 = vld [vmem:[%s183] ss:$2 sm:$0xf]
        %v666 = vadd.f32 %v664, %v665
        %v667 = vld [vmem:[%s186] ss:$2 sm:$0xf]
        %v668 = vadd.f32 %v666, %v667
        %v669 = vpack.c.bf16 %v668, %v668
        %v670 = vunpack.c.l.bf16 %v669
        %v671 = vsub.f32 %v668, %v670
        %v672 = vpack.c.bf16 %v671, %v671
        %v673 = vunpack.c.l.bf16 %v672
        %v674 = vsub.f32 %v671, %v673
        %v675 = vpack.c.bf16 %v674, %v674
        %v677 = vsel %vm356, %v672, 0
        %679 = vmatprep.subr.bf16.mxu0 0
        %680 = vmatpush1.bf16.msra.mxu0 %v362
        %681 = vmatprep.subr.bf16.mxu0 0
        %682 = vmatpush1.bf16.msra.mxu0 0
        %683 = vmatprep.subr.bf16.mxu0 0
        %684 = vmatpush1.bf16.msra.mxu0 0
        %685 = vmatprep.subr.bf16.mxu0 0
        %686 = vmatpush1.bf16.msra.mxu0 0
        %687 = vmatprep.subr.bf16.mxu0 0
        %688 = vmatpush1.bf16.msra.mxu0 0
        %689 = vmatprep.subr.bf16.mxu0 0
        %690 = vmatpush1.bf16.msra.mxu0 0
        %691 = vmatprep.subr.bf16.mxu0 0
        %692 = vmatpush1.bf16.msra.mxu0 0
        %693 = vmatprep.subr.bf16.mxu0 0
        %694 = vmatpush1.bf16.msra.mxu0 0
        %695 = vmatprep.subr.bf16.mxu0 0
        %696 = vmatpush1.bf16.msra.mxu0 0
        %697 = vmatprep.subr.bf16.mxu0 0
        %698 = vmatpush1.bf16.msra.mxu0 0
        %699 = vmatprep.subr.bf16.mxu0 0
        %700 = vmatpush1.bf16.msra.mxu0 0
        %701 = vmatprep.subr.bf16.mxu0 0
        %702 = vmatpush1.bf16.msra.mxu0 0
        %703 = vmatprep.subr.bf16.mxu0 0
        %704 = vmatpush1.bf16.msra.mxu0 0
        %705 = vmatprep.subr.bf16.mxu0 0
        %706 = vmatpush1.bf16.msra.mxu0 0
        %707 = vmatprep.subr.bf16.mxu0 0
        %708 = vmatpush1.bf16.msra.mxu0 0
        %709 = vmatprep.subr.bf16.mxu0 0
        %710 = vmatpush1.bf16.msra.mxu0 0
        %711 = vmatprep.mubr.bf16.mxu0 0
        %712 = vmatmul.mubr.bf16.gmra.mrb[0].mxu0 %v677
        %v713 = vpop.f32.mrb[0].mxu0
        %v714 = vadd.f32 0.0, %v713
        %v715 = vpop.f32.mrb[0].mxu0
        %v716 = vpop.f32.mrb[0].mxu0
        %v717 = vpop.f32.mrb[0].mxu0
        %718 = vdwg.mxu0
        %v720 = vsel %vm356, %v669, 0
        %722 = vmatprep.subr.bf16.mxu0 0
        %723 = vmatpush1.bf16.msra.mxu0 %v362
        %724 = vmatprep.subr.bf16.mxu0 0
        %725 = vmatpush1.bf16.msra.mxu0 0
        %726 = vmatprep.subr.bf16.mxu0 0
        %727 = vmatpush1.bf16.msra.mxu0 0
        %728 = vmatprep.subr.bf16.mxu0 0
        %729 = vmatpush1.bf16.msra.mxu0 0
        %730 = vmatprep.subr.bf16.mxu0 0
        %731 = vmatpush1.bf16.msra.mxu0 0
        %732 = vmatprep.subr.bf16.mxu0 0
        %733 = vmatpush1.bf16.msra.mxu0 0
        %734 = vmatprep.subr.bf16.mxu0 0
        %735 = vmatpush1.bf16.msra.mxu0 0
        %736 = vmatprep.subr.bf16.mxu0 0
        %737 = vmatpush1.bf16.msra.mxu0 0
        %738 = vmatprep.subr.bf16.mxu0 0
        %739 = vmatpush1.bf16.msra.mxu0 0
        %740 = vmatprep.subr.bf16.mxu0 0
        %741 = vmatpush1.bf16.msra.mxu0 0
        %742 = vmatprep.subr.bf16.mxu0 0
        %743 = vmatpush1.bf16.msra.mxu0 0
        %744 = vmatprep.subr.bf16.mxu0 0
        %745 = vmatpush1.bf16.msra.mxu0 0
        %746 = vmatprep.subr.bf16.mxu0 0
        %747 = vmatpush1.bf16.msra.mxu0 0
        %748 = vmatprep.subr.bf16.mxu0 0
        %749 = vmatpush1.bf16.msra.mxu0 0
        %750 = vmatprep.subr.bf16.mxu0 0
        %751 = vmatpush1.bf16.msra.mxu0 0
        %752 = vmatprep.subr.bf16.mxu0 0
        %753 = vmatpush1.bf16.msra.mxu0 0
        %754 = vmatprep.mubr.bf16.mxu0 0
        %755 = vmatmul.mubr.bf16.gmra.mrb[0].mxu0 %v720
        %v756 = vpop.f32.mrb[0].mxu0
        %v757 = vadd.f32 %v714, %v756
        %v758 = vpop.f32.mrb[0].mxu0
        %v759 = vpop.f32.mrb[0].mxu0
        %v760 = vpop.f32.mrb[0].mxu0
        %761 = vdwg.mxu0
        %v763 = vsel %vm356, %v675, 0
        %765 = vmatprep.subr.bf16.mxu0 0
        %766 = vmatpush1.bf16.msra.mxu0 %v362
        %767 = vmatprep.subr.bf16.mxu0 0
        %768 = vmatpush1.bf16.msra.mxu0 0
        %769 = vmatprep.subr.bf16.mxu0 0
        %770 = vmatpush1.bf16.msra.mxu0 0
        %771 = vmatprep.subr.bf16.mxu0 0
        %772 = vmatpush1.bf16.msra.mxu0 0
        %773 = vmatprep.subr.bf16.mxu0 0
        %774 = vmatpush1.bf16.msra.mxu0 0
        %775 = vmatprep.subr.bf16.mxu0 0
        %776 = vmatpush1.bf16.msra.mxu0 0
        %777 = vmatprep.subr.bf16.mxu0 0
        %778 = vmatpush1.bf16.msra.mxu0 0
        %779 = vmatprep.subr.bf16.mxu0 0
        %780 = vmatpush1.bf16.msra.mxu0 0
        %781 = vmatprep.subr.bf16.mxu0 0
        %782 = vmatpush1.bf16.msra.mxu0 0
        %783 = vmatprep.subr.bf16.mxu0 0
        %784 = vmatpush1.bf16.msra.mxu0 0
        %785 = vmatprep.subr.bf16.mxu0 0
        %786 = vmatpush1.bf16.msra.mxu0 0
        %787 = vmatprep.subr.bf16.mxu0 0
        %788 = vmatpush1.bf16.msra.mxu0 0
        %789 = vmatprep.subr.bf16.mxu0 0
        %790 = vmatpush1.bf16.msra.mxu0 0
        %791 = vmatprep.subr.bf16.mxu0 0
        %792 = vmatpush1.bf16.msra.mxu0 0
        %793 = vmatprep.subr.bf16.mxu0 0
        %794 = vmatpush1.bf16.msra.mxu0 0
        %795 = vmatprep.subr.bf16.mxu0 0
        %796 = vmatpush1.bf16.msra.mxu0 0
        %797 = vmatprep.mubr.bf16.mxu0 0
        %798 = vmatmul.mubr.bf16.gmra.mrb[0].mxu0 %v763
        %v799 = vpop.f32.mrb[0].mxu0
        %v800 = vadd.f32 0.0, %v799
        %v801 = vpop.f32.mrb[0].mxu0
        %v802 = vpop.f32.mrb[0].mxu0
        %v803 = vpop.f32.mrb[0].mxu0
        %804 = vdwg.mxu0
        %v805 = vadd.f32 %v757, %v800
        %v806 = vmul.f32 %v805, 0.11111111
        %807 = vst.msk [vmem:[%s134 + $0x4] sm:$0xf] %vm492, %v806
        %v808 = vld [vmem:[%s116 + $0x20] sm:$0xff]
        %v809 = vld [vmem:[%s116 + $0x28] sm:$0xff]
        %810 = vst.msk [vmem:[#allocation2] sm:$0x1] %vm162, 0.0
        %811 = vst.msk [vmem:[#allocation2 + $0x11] sm:$0x1] %vm162, 0.0
        %812 = vst.msk [vmem:[#allocation2 + $0x1] sm:$0xff] %vm165, 0.0
        %813 = vst.msk [vmem:[#allocation2 + $0x9] sm:$0xff] %vm165, 0.0
        %814 = vst.msk [vmem:[#allocation2 + $0x1] sm:$0xff] %vm168, 0.0
        %815 = vst.msk [vmem:[#allocation2 + $0x9] sm:$0xff] %vm168, 0.0
        %818 = vrot.lane.b32.xlu0 %v808, 1
        %v819 = vpop.permute.xlu0 %818
        %820 = vrot.lane.b32.xlu0 %v809, 1
        %v821 = vpop.permute.xlu0 %820
        %824 = vst.msk [vmem:[#allocation2 + $0x1] sm:$0xff] %vm179, %v819
        %825 = vst.msk [vmem:[#allocation2 + $0x9] sm:$0xff] %vm179, %v821
        %v826 = vld [vmem:[#allocation2] ss:$2 sm:$0xff]
        %v827 = vld [vmem:[%s183] ss:$2 sm:$0xff]
        %v828 = vadd.f32 %v826, %v827
        %v829 = vld [vmem:[%s186] ss:$2 sm:$0xff]
        %v830 = vadd.f32 %v828, %v829
        %v831 = vpack.c.bf16 %v830, %v830
        %v832 = vunpack.c.l.bf16 %v831
        %v833 = vsub.f32 %v830, %v832
        %v834 = vpack.c.bf16 %v833, %v833
        %v835 = vunpack.c.l.bf16 %v834
        %v836 = vsub.f32 %v833, %v835
        %v837 = vpack.c.bf16 %v836, %v836
        %v839 = vsel %vm196, %v834, 0
        %841 = vmatprep.subr.bf16.mxu0 0
        %842 = vmatpush1.bf16.msra.mxu0 %v158
        %843 = vmatprep.subr.bf16.mxu0 0
        %844 = vmatpush1.bf16.msra.mxu0 %v202
        %845 = vmatprep.subr.bf16.mxu0 0
        %846 = vmatpush1.bf16.msra.mxu0 0
        %847 = vmatprep.subr.bf16.mxu0 0
        %848 = vmatpush1.bf16.msra.mxu0 0
        %849 = vmatprep.subr.bf16.mxu0 0
        %850 = vmatpush1.bf16.msra.mxu0 0
        %851 = vmatprep.subr.bf16.mxu0 0
        %852 = vmatpush1.bf16.msra.mxu0 0
        %853 = vmatprep.subr.bf16.mxu0 0
        %854 = vmatpush1.bf16.msra.mxu0 0
        %855 = vmatprep.subr.bf16.mxu0 0
        %856 = vmatpush1.bf16.msra.mxu0 0
        %857 = vmatprep.subr.bf16.mxu0 0
        %858 = vmatpush1.bf16.msra.mxu0 0
        %859 = vmatprep.subr.bf16.mxu0 0
        %860 = vmatpush1.bf16.msra.mxu0 0
        %861 = vmatprep.subr.bf16.mxu0 0
        %862 = vmatpush1.bf16.msra.mxu0 0
        %863 = vmatprep.subr.bf16.mxu0 0
        %864 = vmatpush1.bf16.msra.mxu0 0
        %865 = vmatprep.subr.bf16.mxu0 0
        %866 = vmatpush1.bf16.msra.mxu0 0
        %867 = vmatprep.subr.bf16.mxu0 0
        %868 = vmatpush1.bf16.msra.mxu0 0
        %869 = vmatprep.subr.bf16.mxu0 0
        %870 = vmatpush1.bf16.msra.mxu0 0
        %871 = vmatprep.subr.bf16.mxu0 0
        %872 = vmatpush1.bf16.msra.mxu0 0
        %873 = vmatprep.mubr.bf16.mxu0 0
        %874 = vmatmul.mubr.bf16.gmra.mrb[0].mxu0 %v839
        %v875 = vpop.f32.mrb[0].mxu0
        %v876 = vadd.f32 0.0, %v875
        %v877 = vpop.f32.mrb[0].mxu0
        %v878 = vpop.f32.mrb[0].mxu0
        %v879 = vpop.f32.mrb[0].mxu0
        %880 = vdwg.mxu0
        %v882 = vsel %vm196, %v831, 0
        %884 = vmatprep.subr.bf16.mxu0 0
        %885 = vmatpush1.bf16.msra.mxu0 %v158
        %886 = vmatprep.subr.bf16.mxu0 0
        %887 = vmatpush1.bf16.msra.mxu0 %v202
        %888 = vmatprep.subr.bf16.mxu0 0
        %889 = vmatpush1.bf16.msra.mxu0 0
        %890 = vmatprep.subr.bf16.mxu0 0
        %891 = vmatpush1.bf16.msra.mxu0 0
        %892 = vmatprep.subr.bf16.mxu0 0
        %893 = vmatpush1.bf16.msra.mxu0 0
        %894 = vmatprep.subr.bf16.mxu0 0
        %895 = vmatpush1.bf16.msra.mxu0 0
        %896 = vmatprep.subr.bf16.mxu0 0
        %897 = vmatpush1.bf16.msra.mxu0 0
        %898 = vmatprep.subr.bf16.mxu0 0
        %899 = vmatpush1.bf16.msra.mxu0 0
        %900 = vmatprep.subr.bf16.mxu0 0
        %901 = vmatpush1.bf16.msra.mxu0 0
        %902 = vmatprep.subr.bf16.mxu0 0
        %903 = vmatpush1.bf16.msra.mxu0 0
        %904 = vmatprep.subr.bf16.mxu0 0
        %905 = vmatpush1.bf16.msra.mxu0 0
        %906 = vmatprep.subr.bf16.mxu0 0
        %907 = vmatpush1.bf16.msra.mxu0 0
        %908 = vmatprep.subr.bf16.mxu0 0
        %909 = vmatpush1.bf16.msra.mxu0 0
        %910 = vmatprep.subr.bf16.mxu0 0
        %911 = vmatpush1.bf16.msra.mxu0 0
        %912 = vmatprep.subr.bf16.mxu0 0
        %913 = vmatpush1.bf16.msra.mxu0 0
        %914 = vmatprep.subr.bf16.mxu0 0
        %915 = vmatpush1.bf16.msra.mxu0 0
        %916 = vmatprep.mubr.bf16.mxu0 0
        %917 = vmatmul.mubr.bf16.gmra.mrb[0].mxu0 %v882
        %v918 = vpop.f32.mrb[0].mxu0
        %v919 = vadd.f32 %v876, %v918
        %v920 = vpop.f32.mrb[0].mxu0
        %v921 = vpop.f32.mrb[0].mxu0
        %v922 = vpop.f32.mrb[0].mxu0
        %923 = vdwg.mxu0
        %v925 = vsel %vm196, %v837, 0
        %927 = vmatprep.subr.bf16.mxu0 0
        %928 = vmatpush1.bf16.msra.mxu0 %v158
        %929 = vmatprep.subr.bf16.mxu0 0
        %930 = vmatpush1.bf16.msra.mxu0 %v202
        %931 = vmatprep.subr.bf16.mxu0 0
        %932 = vmatpush1.bf16.msra.mxu0 0
        %933 = vmatprep.subr.bf16.mxu0 0
        %934 = vmatpush1.bf16.msra.mxu0 0
        %935 = vmatprep.subr.bf16.mxu0 0
        %936 = vmatpush1.bf16.msra.mxu0 0
        %937 = vmatprep.subr.bf16.mxu0 0
        %938 = vmatpush1.bf16.msra.mxu0 0
        %939 = vmatprep.subr.bf16.mxu0 0
        %940 = vmatpush1.bf16.msra.mxu0 0
        %941 = vmatprep.subr.bf16.mxu0 0
        %942 = vmatpush1.bf16.msra.mxu0 0
        %943 = vmatprep.subr.bf16.mxu0 0
        %944 = vmatpush1.bf16.msra.mxu0 0
        %945 = vmatprep.subr.bf16.mxu0 0
        %946 = vmatpush1.bf16.msra.mxu0 0
        %947 = vmatprep.subr.bf16.mxu0 0
        %948 = vmatpush1.bf16.msra.mxu0 0
        %949 = vmatprep.subr.bf16.mxu0 0
        %950 = vmatpush1.bf16.msra.mxu0 0
        %951 = vmatprep.subr.bf16.mxu0 0
        %952 = vmatpush1.bf16.msra.mxu0 0
        %953 = vmatprep.subr.bf16.mxu0 0
        %954 = vmatpush1.bf16.msra.mxu0 0
        %955 = vmatprep.subr.bf16.mxu0 0
        %956 = vmatpush1.bf16.msra.mxu0 0
        %957 = vmatprep.subr.bf16.mxu0 0
        %958 = vmatpush1.bf16.msra.mxu0 0
        %959 = vmatprep.mubr.bf16.mxu0 0
        %960 = vmatmul.mubr.bf16.gmra.mrb[0].mxu0 %v925
        %v961 = vpop.f32.mrb[0].mxu0
        %v962 = vadd.f32 0.0, %v961
        %v963 = vpop.f32.mrb[0].mxu0
        %v964 = vpop.f32.mrb[0].mxu0
        %v965 = vpop.f32.mrb[0].mxu0
        %966 = vdwg.mxu0
        %v967 = vadd.f32 %v919, %v962
        %v968 = vmul.f32 %v967, 0.11111111
        %969 = vst.msk [vmem:[#allocation2] sm:$0x1] %vm332, 0.0
        %970 = vst.msk [vmem:[#allocation2 + $0x9] sm:$0x1] %vm332, 0.0
        %971 = vst.msk [vmem:[#allocation2 + $0x1] sm:$0xff] %vm165, 0.0
        %972 = vst.msk [vmem:[#allocation2 + $0x1] sm:$0xff] %vm336, 0.0
        %974 = vrot.lane.b32.xlu0 %v968, 1
        %v975 = vpop.permute.xlu0 %974
        %977 = vst.msk [vmem:[#allocation2 + $0x1] sm:$0xff] %vm342, %v975
        %v978 = vld [vmem:[#allocation2] ss:$2 sm:$0xf]
        %v979 = vld [vmem:[%s183] ss:$2 sm:$0xf]
        %v980 = vadd.f32 %v978, %v979
        %v981 = vld [vmem:[%s186] ss:$2 sm:$0xf]
        %v982 = vadd.f32 %v980, %v981
        %v983 = vpack.c.bf16 %v982, %v982
        %v984 = vunpack.c.l.bf16 %v983
        %v985 = vsub.f32 %v982, %v984
        %v986 = vpack.c.bf16 %v985, %v985
        %v987 = vunpack.c.l.bf16 %v986
        %v988 = vsub.f32 %v985, %v987
        %v989 = vpack.c.bf16 %v988, %v988
        %v991 = vsel %vm356, %v986, 0
        %993 = vmatprep.subr.bf16.mxu0 0
        %994 = vmatpush1.bf16.msra.mxu0 %v362
        %995 = vmatprep.subr.bf16.mxu0 0
        %996 = vmatpush1.bf16.msra.mxu0 0
        %997 = vmatprep.subr.bf16.mxu0 0
        %998 = vmatpush1.bf16.msra.mxu0 0
        %999 = vmatprep.subr.bf16.mxu0 0
        %1000 = vmatpush1.bf16.msra.mxu0 0
        %1001 = vmatprep.subr.bf16.mxu0 0
        %1002 = vmatpush1.bf16.msra.mxu0 0
        %1003 = vmatprep.subr.bf16.mxu0 0
        %1004 = vmatpush1.bf16.msra.mxu0 0
        %1005 = vmatprep.subr.bf16.mxu0 0
        %1006 = vmatpush1.bf16.msra.mxu0 0
        %1007 = vmatprep.subr.bf16.mxu0 0
        %1008 = vmatpush1.bf16.msra.mxu0 0
        %1009 = vmatprep.subr.bf16.mxu0 0
        %1010 = vmatpush1.bf16.msra.mxu0 0
        %1011 = vmatprep.subr.bf16.mxu0 0
        %1012 = vmatpush1.bf16.msra.mxu0 0
        %1013 = vmatprep.subr.bf16.mxu0 0
        %1014 = vmatpush1.bf16.msra.mxu0 0
        %1015 = vmatprep.subr.bf16.mxu0 0
        %1016 = vmatpush1.bf16.msra.mxu0 0
        %1017 = vmatprep.subr.bf16.mxu0 0
        %1018 = vmatpush1.bf16.msra.mxu0 0
        %1019 = vmatprep.subr.bf16.mxu0 0
        %1020 = vmatpush1.bf16.msra.mxu0 0
        %1021 = vmatprep.subr.bf16.mxu0 0
        %1022 = vmatpush1.bf16.msra.mxu0 0
        %1023 = vmatprep.subr.bf16.mxu0 0
        %1024 = vmatpush1.bf16.msra.mxu0 0
        %1025 = vmatprep.mubr.bf16.mxu0 0
        %1026 = vmatmul.mubr.bf16.gmra.mrb[0].mxu0 %v991
        %v1027 = vpop.f32.mrb[0].mxu0
        %v1028 = vadd.f32 0.0, %v1027
        %v1029 = vpop.f32.mrb[0].mxu0
        %v1030 = vpop.f32.mrb[0].mxu0
        %v1031 = vpop.f32.mrb[0].mxu0
        %1032 = vdwg.mxu0
        %v1034 = vsel %vm356, %v983, 0
        %1036 = vmatprep.subr.bf16.mxu0 0
        %1037 = vmatpush1.bf16.msra.mxu0 %v362
        %1038 = vmatprep.subr.bf16.mxu0 0
        %1039 = vmatpush1.bf16.msra.mxu0 0
        %1040 = vmatprep.subr.bf16.mxu0 0
        %1041 = vmatpush1.bf16.msra.mxu0 0
        %1042 = vmatprep.subr.bf16.mxu0 0
        %1043 = vmatpush1.bf16.msra.mxu0 0
        %1044 = vmatprep.subr.bf16.mxu0 0
        %1045 = vmatpush1.bf16.msra.mxu0 0
        %1046 = vmatprep.subr.bf16.mxu0 0
        %1047 = vmatpush1.bf16.msra.mxu0 0
        %1048 = vmatprep.subr.bf16.mxu0 0
        %1049 = vmatpush1.bf16.msra.mxu0 0
        %1050 = vmatprep.subr.bf16.mxu0 0
        %1051 = vmatpush1.bf16.msra.mxu0 0
        %1052 = vmatprep.subr.bf16.mxu0 0
        %1053 = vmatpush1.bf16.msra.mxu0 0
        %1054 = vmatprep.subr.bf16.mxu0 0
        %1055 = vmatpush1.bf16.msra.mxu0 0
        %1056 = vmatprep.subr.bf16.mxu0 0
        %1057 = vmatpush1.bf16.msra.mxu0 0
        %1058 = vmatprep.subr.bf16.mxu0 0
        %1059 = vmatpush1.bf16.msra.mxu0 0
        %1060 = vmatprep.subr.bf16.mxu0 0
        %1061 = vmatpush1.bf16.msra.mxu0 0
        %1062 = vmatprep.subr.bf16.mxu0 0
        %1063 = vmatpush1.bf16.msra.mxu0 0
        %1064 = vmatprep.subr.bf16.mxu0 0
        %1065 = vmatpush1.bf16.msra.mxu0 0
        %1066 = vmatprep.subr.bf16.mxu0 0
        %1067 = vmatpush1.bf16.msra.mxu0 0
        %1068 = vmatprep.mubr.bf16.mxu0 0
        %1069 = vmatmul.mubr.bf16.gmra.mrb[0].mxu0 %v1034
        %v1070 = vpop.f32.mrb[0].mxu0
        %v1071 = vadd.f32 %v1028, %v1070
        %v1072 = vpop.f32.mrb[0].mxu0
        %v1073 = vpop.f32.mrb[0].mxu0
        %v1074 = vpop.f32.mrb[0].mxu0
        %1075 = vdwg.mxu0
        %v1077 = vsel %vm356, %v989, 0
        %1079 = vmatprep.subr.bf16.mxu0 0
        %1080 = vmatpush1.bf16.msra.mxu0 %v362
        %1081 = vmatprep.subr.bf16.mxu0 0
        %1082 = vmatpush1.bf16.msra.mxu0 0
        %1083 = vmatprep.subr.bf16.mxu0 0
        %1084 = vmatpush1.bf16.msra.mxu0 0
        %1085 = vmatprep.subr.bf16.mxu0 0
        %1086 = vmatpush1.bf16.msra.mxu0 0
        %1087 = vmatprep.subr.bf16.mxu0 0
        %1088 = vmatpush1.bf16.msra.mxu0 0
        %1089 = vmatprep.subr.bf16.mxu0 0
        %1090 = vmatpush1.bf16.msra.mxu0 0
        %1091 = vmatprep.subr.bf16.mxu0 0
        %1092 = vmatpush1.bf16.msra.mxu0 0
        %1093 = vmatprep.subr.bf16.mxu0 0
        %1094 = vmatpush1.bf16.msra.mxu0 0
        %1095 = vmatprep.subr.bf16.mxu0 0
        %1096 = vmatpush1.bf16.msra.mxu0 0
        %1097 = vmatprep.subr.bf16.mxu0 0
        %1098 = vmatpush1.bf16.msra.mxu0 0
        %1099 = vmatprep.subr.bf16.mxu0 0
        %1100 = vmatpush1.bf16.msra.mxu0 0
        %1101 = vmatprep.subr.bf16.mxu0 0
        %1102 = vmatpush1.bf16.msra.mxu0 0
        %1103 = vmatprep.subr.bf16.mxu0 0
        %1104 = vmatpush1.bf16.msra.mxu0 0
        %1105 = vmatprep.subr.bf16.mxu0 0
        %1106 = vmatpush1.bf16.msra.mxu0 0
        %1107 = vmatprep.subr.bf16.mxu0 0
        %1108 = vmatpush1.bf16.msra.mxu0 0
        %1109 = vmatprep.subr.bf16.mxu0 0
        %1110 = vmatpush1.bf16.msra.mxu0 0
        %1111 = vmatprep.mubr.bf16.mxu0 0
        %1112 = vmatmul.mubr.bf16.gmra.mrb[0].mxu0 %v1077
        %v1113 = vpop.f32.mrb[0].mxu0
        %v1114 = vadd.f32 0.0, %v1113
        %v1115 = vpop.f32.mrb[0].mxu0
        %v1116 = vpop.f32.mrb[0].mxu0
        %v1117 = vpop.f32.mrb[0].mxu0
        %1118 = vdwg.mxu0
        %v1119 = vadd.f32 %v1071, %v1114
        %v1120 = vmul.f32 %v1119, 0.11111111
        %1121 = vst.msk [vmem:[%s134 + $0x8] sm:$0xf] %vm492, %v1120
        %v1122 = vld [vmem:[%s116 + $0x30] sm:$0xff]
        %v1123 = vld [vmem:[%s116 + $0x38] sm:$0xff]
        %1124 = vst.msk [vmem:[#allocation2] sm:$0x1] %vm162, 0.0
        %1125 = vst.msk [vmem:[#allocation2 + $0x11] sm:$0x1] %vm162, 0.0
        %1126 = vst.msk [vmem:[#allocation2 + $0x1] sm:$0xff] %vm165, 0.0
        %1127 = vst.msk [vmem:[#allocation2 + $0x9] sm:$0xff] %vm165, 0.0
        %1128 = vst.msk [vmem:[#allocation2 + $0x1] sm:$0xff] %vm168, 0.0
        %1129 = vst.msk [vmem:[#allocation2 + $0x9] sm:$0xff] %vm168, 0.0
        %1132 = vrot.lane.b32.xlu0 %v1122, 1
        %v1133 = vpop.permute.xlu0 %1132
        %1134 = vrot.lane.b32.xlu0 %v1123, 1
        %v1135 = vpop.permute.xlu0 %1134
        %1138 = vst.msk [vmem:[#allocation2 + $0x1] sm:$0xff] %vm179, %v1133
        %1139 = vst.msk [vmem:[#allocation2 + $0x9] sm:$0xff] %vm179, %v1135
        %v1140 = vld [vmem:[#allocation2] ss:$2 sm:$0xff]
        %v1141 = vld [vmem:[%s183] ss:$2 sm:$0xff]
        %v1142 = vadd.f32 %v1140, %v1141
        %v1143 = vld [vmem:[%s186] ss:$2 sm:$0xff]
        %v1144 = vadd.f32 %v1142, %v1143
        %v1145 = vpack.c.bf16 %v1144, %v1144
        %v1146 = vunpack.c.l.bf16 %v1145
        %v1147 = vsub.f32 %v1144, %v1146
        %v1148 = vpack.c.bf16 %v1147, %v1147
        %v1149 = vunpack.c.l.bf16 %v1148
        %v1150 = vsub.f32 %v1147, %v1149
        %v1151 = vpack.c.bf16 %v1150, %v1150
        %v1153 = vsel %vm196, %v1148, 0
        %1155 = vmatprep.subr.bf16.mxu0 0
        %1156 = vmatpush1.bf16.msra.mxu0 %v158
        %1157 = vmatprep.subr.bf16.mxu0 0
        %1158 = vmatpush1.bf16.msra.mxu0 %v202
        %1159 = vmatprep.subr.bf16.mxu0 0
        %1160 = vmatpush1.bf16.msra.mxu0 0
        %1161 = vmatprep.subr.bf16.mxu0 0
        %1162 = vmatpush1.bf16.msra.mxu0 0
        %1163 = vmatprep.subr.bf16.mxu0 0
        %1164 = vmatpush1.bf16.msra.mxu0 0
        %1165 = vmatprep.subr.bf16.mxu0 0
        %1166 = vmatpush1.bf16.msra.mxu0 0
        %1167 = vmatprep.subr.bf16.mxu0 0
        %1168 = vmatpush1.bf16.msra.mxu0 0
        %1169 = vmatprep.subr.bf16.mxu0 0
        %1170 = vmatpush1.bf16.msra.mxu0 0
        %1171 = vmatprep.subr.bf16.mxu0 0
        %1172 = vmatpush1.bf16.msra.mxu0 0
        %1173 = vmatprep.subr.bf16.mxu0 0
        %1174 = vmatpush1.bf16.msra.mxu0 0
        %1175 = vmatprep.subr.bf16.mxu0 0
        %1176 = vmatpush1.bf16.msra.mxu0 0
        %1177 = vmatprep.subr.bf16.mxu0 0
        %1178 = vmatpush1.bf16.msra.mxu0 0
        %1179 = vmatprep.subr.bf16.mxu0 0
        %1180 = vmatpush1.bf16.msra.mxu0 0
        %1181 = vmatprep.subr.bf16.mxu0 0
        %1182 = vmatpush1.bf16.msra.mxu0 0
        %1183 = vmatprep.subr.bf16.mxu0 0
        %1184 = vmatpush1.bf16.msra.mxu0 0
        %1185 = vmatprep.subr.bf16.mxu0 0
        %1186 = vmatpush1.bf16.msra.mxu0 0
        %1187 = vmatprep.mubr.bf16.mxu0 0
        %1188 = vmatmul.mubr.bf16.gmra.mrb[0].mxu0 %v1153
        %v1189 = vpop.f32.mrb[0].mxu0
        %v1190 = vadd.f32 0.0, %v1189
        %v1191 = vpop.f32.mrb[0].mxu0
        %v1192 = vpop.f32.mrb[0].mxu0
        %v1193 = vpop.f32.mrb[0].mxu0
        %1194 = vdwg.mxu0
        %v1196 = vsel %vm196, %v1145, 0
        %1198 = vmatprep.subr.bf16.mxu0 0
        %1199 = vmatpush1.bf16.msra.mxu0 %v158
        %1200 = vmatprep.subr.bf16.mxu0 0
        %1201 = vmatpush1.bf16.msra.mxu0 %v202
        %1202 = vmatprep.subr.bf16.mxu0 0
        %1203 = vmatpush1.bf16.msra.mxu0 0
        %1204 = vmatprep.subr.bf16.mxu0 0
        %1205 = vmatpush1.bf16.msra.mxu0 0
        %1206 = vmatprep.subr.bf16.mxu0 0
        %1207 = vmatpush1.bf16.msra.mxu0 0
        %1208 = vmatprep.subr.bf16.mxu0 0
        %1209 = vmatpush1.bf16.msra.mxu0 0
        %1210 = vmatprep.subr.bf16.mxu0 0
        %1211 = vmatpush1.bf16.msra.mxu0 0
        %1212 = vmatprep.subr.bf16.mxu0 0
        %1213 = vmatpush1.bf16.msra.mxu0 0
        %1214 = vmatprep.subr.bf16.mxu0 0
        %1215 = vmatpush1.bf16.msra.mxu0 0
        %1216 = vmatprep.subr.bf16.mxu0 0
        %1217 = vmatpush1.bf16.msra.mxu0 0
        %1218 = vmatprep.subr.bf16.mxu0 0
        %1219 = vmatpush1.bf16.msra.mxu0 0
        %1220 = vmatprep.subr.bf16.mxu0 0
        %1221 = vmatpush1.bf16.msra.mxu0 0
        %1222 = vmatprep.subr.bf16.mxu0 0
        %1223 = vmatpush1.bf16.msra.mxu0 0
        %1224 = vmatprep.subr.bf16.mxu0 0
        %1225 = vmatpush1.bf16.msra.mxu0 0
        %1226 = vmatprep.subr.bf16.mxu0 0
        %1227 = vmatpush1.bf16.msra.mxu0 0
        %1228 = vmatprep.subr.bf16.mxu0 0
        %1229 = vmatpush1.bf16.msra.mxu0 0
        %1230 = vmatprep.mubr.bf16.mxu0 0
        %1231 = vmatmul.mubr.bf16.gmra.mrb[0].mxu0 %v1196
        %v1232 = vpop.f32.mrb[0].mxu0
        %v1233 = vadd.f32 %v1190, %v1232
        %v1234 = vpop.f32.mrb[0].mxu0
        %v1235 = vpop.f32.mrb[0].mxu0
        %v1236 = vpop.f32.mrb[0].mxu0
        %1237 = vdwg.mxu0
        %v1239 = vsel %vm196, %v1151, 0
        %1241 = vmatprep.subr.bf16.mxu0 0
        %1242 = vmatpush1.bf16.msra.mxu0 %v158
        %1243 = vmatprep.subr.bf16.mxu0 0
        %1244 = vmatpush1.bf16.msra.mxu0 %v202
        %1245 = vmatprep.subr.bf16.mxu0 0
        %1246 = vmatpush1.bf16.msra.mxu0 0
        %1247 = vmatprep.subr.bf16.mxu0 0
        %1248 = vmatpush1.bf16.msra.mxu0 0
        %1249 = vmatprep.subr.bf16.mxu0 0
        %1250 = vmatpush1.bf16.msra.mxu0 0
        %1251 = vmatprep.subr.bf16.mxu0 0
        %1252 = vmatpush1.bf16.msra.mxu0 0
        %1253 = vmatprep.subr.bf16.mxu0 0
        %1254 = vmatpush1.bf16.msra.mxu0 0
        %1255 = vmatprep.subr.bf16.mxu0 0
        %1256 = vmatpush1.bf16.msra.mxu0 0
        %1257 = vmatprep.subr.bf16.mxu0 0
        %1258 = vmatpush1.bf16.msra.mxu0 0
        %1259 = vmatprep.subr.bf16.mxu0 0
        %1260 = vmatpush1.bf16.msra.mxu0 0
        %1261 = vmatprep.subr.bf16.mxu0 0
        %1262 = vmatpush1.bf16.msra.mxu0 0
        %1263 = vmatprep.subr.bf16.mxu0 0
        %1264 = vmatpush1.bf16.msra.mxu0 0
        %1265 = vmatprep.subr.bf16.mxu0 0
        %1266 = vmatpush1.bf16.msra.mxu0 0
        %1267 = vmatprep.subr.bf16.mxu0 0
        %1268 = vmatpush1.bf16.msra.mxu0 0
        %1269 = vmatprep.subr.bf16.mxu0 0
        %1270 = vmatpush1.bf16.msra.mxu0 0
        %1271 = vmatprep.subr.bf16.mxu0 0
        %1272 = vmatpush1.bf16.msra.mxu0 0
        %1273 = vmatprep.mubr.bf16.mxu0 0
        %1274 = vmatmul.mubr.bf16.gmra.mrb[0].mxu0 %v1239
        %v1275 = vpop.f32.mrb[0].mxu0
        %v1276 = vadd.f32 0.0, %v1275
        %v1277 = vpop.f32.mrb[0].mxu0
        %v1278 = vpop.f32.mrb[0].mxu0
        %v1279 = vpop.f32.mrb[0].mxu0
        %1280 = vdwg.mxu0
        %v1281 = vadd.f32 %v1233, %v1276
        %v1282 = vmul.f32 %v1281, 0.11111111
        %1283 = vst.msk [vmem:[#allocation2] sm:$0x1] %vm332, 0.0
        %1284 = vst.msk [vmem:[#allocation2 + $0x9] sm:$0x1] %vm332, 0.0
        %1285 = vst.msk [vmem:[#allocation2 + $0x1] sm:$0xff] %vm165, 0.0
        %1286 = vst.msk [vmem:[#allocation2 + $0x1] sm:$0xff] %vm336, 0.0
        %1288 = vrot.lane.b32.xlu0 %v1282, 1
        %v1289 = vpop.permute.xlu0 %1288
        %1291 = vst.msk [vmem:[#allocation2 + $0x1] sm:$0xff] %vm342, %v1289
        %v1292 = vld [vmem:[#allocation2] ss:$2 sm:$0xf]
        %v1293 = vld [vmem:[%s183] ss:$2 sm:$0xf]
        %v1294 = vadd.f32 %v1292, %v1293
        %v1295 = vld [vmem:[%s186] ss:$2 sm:$0xf]
        %v1296 = vadd.f32 %v1294, %v1295
        %v1297 = vpack.c.bf16 %v1296, %v1296
        %v1298 = vunpack.c.l.bf16 %v1297
        %v1299 = vsub.f32 %v1296, %v1298
        %v1300 = vpack.c.bf16 %v1299, %v1299
        %v1301 = vunpack.c.l.bf16 %v1300
        %v1302 = vsub.f32 %v1299, %v1301
        %v1303 = vpack.c.bf16 %v1302, %v1302
        %v1305 = vsel %vm356, %v1300, 0
        %1307 = vmatprep.subr.bf16.mxu0 0
        %1308 = vmatpush1.bf16.msra.mxu0 %v362
        %1309 = vmatprep.subr.bf16.mxu0 0
        %1310 = vmatpush1.bf16.msra.mxu0 0
        %1311 = vmatprep.subr.bf16.mxu0 0
        %1312 = vmatpush1.bf16.msra.mxu0 0
        %1313 = vmatprep.subr.bf16.mxu0 0
        %1314 = vmatpush1.bf16.msra.mxu0 0
        %1315 = vmatprep.subr.bf16.mxu0 0
        %1316 = vmatpush1.bf16.msra.mxu0 0
        %1317 = vmatprep.subr.bf16.mxu0 0
        %1318 = vmatpush1.bf16.msra.mxu0 0
        %1319 = vmatprep.subr.bf16.mxu0 0
        %1320 = vmatpush1.bf16.msra.mxu0 0
        %1321 = vmatprep.subr.bf16.mxu0 0
        %1322 = vmatpush1.bf16.msra.mxu0 0
        %1323 = vmatprep.subr.bf16.mxu0 0
        %1324 = vmatpush1.bf16.msra.mxu0 0
        %1325 = vmatprep.subr.bf16.mxu0 0
        %1326 = vmatpush1.bf16.msra.mxu0 0
        %1327 = vmatprep.subr.bf16.mxu0 0
        %1328 = vmatpush1.bf16.msra.mxu0 0
        %1329 = vmatprep.subr.bf16.mxu0 0
        %1330 = vmatpush1.bf16.msra.mxu0 0
        %1331 = vmatprep.subr.bf16.mxu0 0
        %1332 = vmatpush1.bf16.msra.mxu0 0
        %1333 = vmatprep.subr.bf16.mxu0 0
        %1334 = vmatpush1.bf16.msra.mxu0 0
        %1335 = vmatprep.subr.bf16.mxu0 0
        %1336 = vmatpush1.bf16.msra.mxu0 0
        %1337 = vmatprep.subr.bf16.mxu0 0
        %1338 = vmatpush1.bf16.msra.mxu0 0
        %1339 = vmatprep.mubr.bf16.mxu0 0
        %1340 = vmatmul.mubr.bf16.gmra.mrb[0].mxu0 %v1305
        %v1341 = vpop.f32.mrb[0].mxu0
        %v1342 = vadd.f32 0.0, %v1341
        %v1343 = vpop.f32.mrb[0].mxu0
        %v1344 = vpop.f32.mrb[0].mxu0
        %v1345 = vpop.f32.mrb[0].mxu0
        %1346 = vdwg.mxu0
        %v1348 = vsel %vm356, %v1297, 0
        %1350 = vmatprep.subr.bf16.mxu0 0
        %1351 = vmatpush1.bf16.msra.mxu0 %v362
        %1352 = vmatprep.subr.bf16.mxu0 0
        %1353 = vmatpush1.bf16.msra.mxu0 0
        %1354 = vmatprep.subr.bf16.mxu0 0
        %1355 = vmatpush1.bf16.msra.mxu0 0
        %1356 = vmatprep.subr.bf16.mxu0 0
        %1357 = vmatpush1.bf16.msra.mxu0 0
        %1358 = vmatprep.subr.bf16.mxu0 0
        %1359 = vmatpush1.bf16.msra.mxu0 0
        %1360 = vmatprep.subr.bf16.mxu0 0
        %1361 = vmatpush1.bf16.msra.mxu0 0
        %1362 = vmatprep.subr.bf16.mxu0 0
        %1363 = vmatpush1.bf16.msra.mxu0 0
        %1364 = vmatprep.subr.bf16.mxu0 0
        %1365 = vmatpush1.bf16.msra.mxu0 0
        %1366 = vmatprep.subr.bf16.mxu0 0
        %1367 = vmatpush1.bf16.msra.mxu0 0
        %1368 = vmatprep.subr.bf16.mxu0 0
        %1369 = vmatpush1.bf16.msra.mxu0 0
        %1370 = vmatprep.subr.bf16.mxu0 0
        %1371 = vmatpush1.bf16.msra.mxu0 0
        %1372 = vmatprep.subr.bf16.mxu0 0
        %1373 = vmatpush1.bf16.msra.mxu0 0
        %1374 = vmatprep.subr.bf16.mxu0 0
        %1375 = vmatpush1.bf16.msra.mxu0 0
        %1376 = vmatprep.subr.bf16.mxu0 0
        %1377 = vmatpush1.bf16.msra.mxu0 0
        %1378 = vmatprep.subr.bf16.mxu0 0
        %1379 = vmatpush1.bf16.msra.mxu0 0
        %1380 = vmatprep.subr.bf16.mxu0 0
        %1381 = vmatpush1.bf16.msra.mxu0 0
        %1382 = vmatprep.mubr.bf16.mxu0 0
        %1383 = vmatmul.mubr.bf16.gmra.mrb[0].mxu0 %v1348
        %v1384 = vpop.f32.mrb[0].mxu0
        %v1385 = vadd.f32 %v1342, %v1384
        %v1386 = vpop.f32.mrb[0].mxu0
        %v1387 = vpop.f32.mrb[0].mxu0
        %v1388 = vpop.f32.mrb[0].mxu0
        %1389 = vdwg.mxu0
        %v1391 = vsel %vm356, %v1303, 0
        %1393 = vmatprep.subr.bf16.mxu0 0
        %1394 = vmatpush1.bf16.msra.mxu0 %v362
        %1395 = vmatprep.subr.bf16.mxu0 0
        %1396 = vmatpush1.bf16.msra.mxu0 0
        %1397 = vmatprep.subr.bf16.mxu0 0
        %1398 = vmatpush1.bf16.msra.mxu0 0
        %1399 = vmatprep.subr.bf16.mxu0 0
        %1400 = vmatpush1.bf16.msra.mxu0 0
        %1401 = vmatprep.subr.bf16.mxu0 0
        %1402 = vmatpush1.bf16.msra.mxu0 0
        %1403 = vmatprep.subr.bf16.mxu0 0
        %1404 = vmatpush1.bf16.msra.mxu0 0
        %1405 = vmatprep.subr.bf16.mxu0 0
        %1406 = vmatpush1.bf16.msra.mxu0 0
        %1407 = vmatprep.subr.bf16.mxu0 0
        %1408 = vmatpush1.bf16.msra.mxu0 0
        %1409 = vmatprep.subr.bf16.mxu0 0
        %1410 = vmatpush1.bf16.msra.mxu0 0
        %1411 = vmatprep.subr.bf16.mxu0 0
        %1412 = vmatpush1.bf16.msra.mxu0 0
        %1413 = vmatprep.subr.bf16.mxu0 0
        %1414 = vmatpush1.bf16.msra.mxu0 0
        %1415 = vmatprep.subr.bf16.mxu0 0
        %1416 = vmatpush1.bf16.msra.mxu0 0
        %1417 = vmatprep.subr.bf16.mxu0 0
        %1418 = vmatpush1.bf16.msra.mxu0 0
        %1419 = vmatprep.subr.bf16.mxu0 0
        %1420 = vmatpush1.bf16.msra.mxu0 0
        %1421 = vmatprep.subr.bf16.mxu0 0
        %1422 = vmatpush1.bf16.msra.mxu0 0
        %1423 = vmatprep.subr.bf16.mxu0 0
        %1424 = vmatpush1.bf16.msra.mxu0 0
        %1425 = vmatprep.mubr.bf16.mxu0 0
        %1426 = vmatmul.mubr.bf16.gmra.mrb[0].mxu0 %v1391
        %v1427 = vpop.f32.mrb[0].mxu0
        %v1428 = vadd.f32 0.0, %v1427
        %v1429 = vpop.f32.mrb[0].mxu0
        %v1430 = vpop.f32.mrb[0].mxu0
        %v1431 = vpop.f32.mrb[0].mxu0
        %1432 = vdwg.mxu0
        %v1433 = vadd.f32 %v1385, %v1428
        %v1434 = vmul.f32 %v1433, 0.11111111
        %1435 = vst.msk [vmem:[%s134 + $0xc] sm:$0xf] %vm492, %v1434
        %s1436 = sand.u32 %s52, 1
        %s1437 = scalar_lea.sflag [#allocation5], %s1436
        %s1438 = sand.u32 %s52, 1
        %s1439 = smul.addr %s1438, 16
        %s1440 = scalar_lea.vmem [#allocation6], %s1439
        // Predicated region
        $region29: #{input_projection_a.1} parent=23 // pred_check
          %p1441 = pneg %p62
        $region30: #{input_projection_a.1} parent=23 // pred_check_branch
          %1443 = sbr.rel (%p1441) target = $region32
        $region31: #{input_projection_a.1} parent=23 // pred_region
          %s1445 = ssub.s32 256, 256
          %1446 = vsyncadd %s1437, %s1445
          %s1447 = smul.addr %s18, 2
          %s1448 = smul.addr %s1447, 128
          %s1449 = scalar_lea.hbm %s1, %s1448
          %s1450 = sshll.u32 %s1440, 4
          %s1451 = int_to_ptr.vmem [resolvable:$true] %s1450
          %1456 = dma.vmem_to_hbm [thread:$0]  %s1451, 256, %s1449, %s1437, 128, 128, 8
        $region32: #{input_projection_a.1} parent=23 // pred_fallthru
          _
      $region24: #{input_projection_a.1} parent=5 // pred_fallthru
        _
      %p1457 = scmp.le.s32.totalorder 2, %s13
      // Predicated region
      $region33: #{input_projection_a.1} parent=5 // pred_check
        %p1458 = pneg %p1457
      $region34: #{input_projection_a.1} parent=5 // pred_check_branch
        %1460 = sbr.rel (%p1458) target = $region36
      $region35: #{input_projection_a.1} parent=5 // pred_region
        %s1461 = ssub.s32 %s13, 2
        // Predicated region
        $region37: #{input_projection_a.1} parent=35 // pred_check
          %p1462 = pneg %p68
        $region38: #{input_projection_a.1} parent=35 // pred_check_branch
          %1464 = sbr.rel (%p1462) target = $region40
        $region39: #{input_projection_a.1} parent=35 // pred_region
          %s1465 = sand.u32 %s53, 1
          %s1466 = scalar_lea.sflag [#allocation5], %s1465
          %s1467 = sand.u32 %s53, 1
          %s1468 = smul.addr %s1467, 16
          %s1469 = scalar_lea.vmem [#allocation6], %s1468
          %1470 = dma.done %s1466, 256
        $region40: #{input_projection_a.1} parent=35 // pred_fallthru
          _
      $region36: #{input_projection_a.1} parent=5 // pred_fallthru
        _
    $region6: #{input_projection_a.1} parent=1 // loop_footer
      %s17 = sadd.s32 1, %s13
    $region7: #{input_projection_a.1} parent=1 // loop_footer_branch
      %12 = sbr.rel target = $region3
    $region8: #{input_projection_a.1} parent=1 // loop_exit
      _
    %1471 = vsyncpa [#allocation4], 1
    %s1472 = scalar_lea.sflag [#allocation4], 1
    %1473 = vsyncpa %s1472, 1
    %1474 = vsyncpa [#allocation5], 1
    %s1475 = scalar_lea.sflag [#allocation5], 1
    %1476 = vsyncpa %s1475, 1

</llo_original>
